<compile_context>
chip_gen: v5e
topology: v5e:2x2
jax: 0.10.0
libtpu: 0.0.40
codegen_flags: <defaults>
</compile_context>

<pallas_src>
import functools

import jax
import jax.numpy as jnp
from jax import lax
from jax.experimental import pallas as pl
from jax.experimental.pallas import tpu as pltpu


def _pick_tile_n(n: int) -> int:
    """Largest lane-dense tile that divides n while keeping grid >= 2."""
    for tn in (8192, 4096, 2048, 1024, 512, 256, 128):
        if n % tn == 0 and n // tn >= 2:
            return tn
    return n  # tiny N: single full-width block


def _text2vec_kernel(x_ref, w_ref, b_ref, out_ref):
    """One grid step computes a (B, TN) tile of relu(x @ W + b).

    x_ref:   (B, E)   bf16, VMEM (pre-gathered embeddings, constant index ->
                            fetched once and resident across the grid)
    w_ref:   (E, TN)  bf16, VMEM (weight tile, streamed through HBM once)
    b_ref:   (1, TN)  f32,  VMEM (bias tile)
    out_ref: (B, TN)  f32,  VMEM
    """
    y = jnp.dot(x_ref[...], w_ref[...],
                preferred_element_type=jnp.float32)           # (B, TN), f32 acc
    y = y + b_ref[...]                                        # bias broadcast
    out_ref[...] = jnp.maximum(y, 0.0).astype(out_ref.dtype)  # ReLU, direct store


def prepare_text2vec_params(emb_table, fc_weight, fc_bias):
    """One-time parameter preparation (do NOT run per forward call).

    emb_table: (max_batches, E) f32  — nn.Embedding weight
    fc_weight: (H*W, E) f32          — nn.Linear weight (PyTorch layout)
    fc_bias:   (H*W,)   f32          — nn.Linear bias
    """
    table = jnp.asarray(emb_table, jnp.float32)
    w_t = jnp.asarray(fc_weight, jnp.float32).T.astype(jnp.bfloat16)  # (E, N) bf16
    bias2d = jnp.asarray(fc_bias, jnp.float32).reshape(1, -1)         # (1, N) f32
    return {"table": table, "w_t": w_t, "bias": bias2d}


@functools.partial(jax.jit, static_argnames=("target_size",))
def text2vec_forward(batch_indices, params, target_size=(128, 128)):
    """Pallas TPU implementation of Text2Vec.forward.

    batch_indices: (B,) int32
    params:        dict from prepare_text2vec_params
    returns:       (B, H, W) f32
    """
    H, W = target_size
    N = H * W
    table = params["table"]                 # (M, E) f32
    w_t = params["w_t"]                     # (E, N) bf16
    bias2d = params["bias"]                 # (1, N) f32
    M, E = table.shape
    assert w_t.shape == (E, N), w_t.shape
    assert bias2d.shape == (1, N), bias2d.shape
    assert batch_indices.ndim == 1, "batch_indices must be (B,)"

    B = batch_indices.shape[0]

    # Gather once in the wrapper (tiny: B*E elements).  Clamp so an
    # out-of-range index cannot produce a silent OOB read.
    idx = jnp.clip(batch_indices.astype(jnp.int32), 0, M - 1)
    x = table[idx].astype(jnp.bfloat16)     # (B, E) bf16

    TN = _pick_tile_n(N)
    grid = (N // TN,)

    out_flat = pl.pallas_call(
        _text2vec_kernel,
        out_shape=jax.ShapeDtypeStruct((B, N), jnp.float32),
        grid_spec=pl.GridSpec(
            grid=grid,
            in_specs=[
                pl.BlockSpec((B, E), lambda j: (0, 0)),    # activations, resident
                pl.BlockSpec((E, TN), lambda j: (0, j)),   # weight tile (streamed once)
                pl.BlockSpec((1, TN), lambda j: (0, j)),   # bias tile
            ],
            out_specs=pl.BlockSpec((B, TN), lambda j: (0, j)),
        ),
        compiler_params=pltpu.CompilerParams(
            # Independent output tiles -> v7x can shard the 2 tiles across
            # its two TensorCores; harmless on single-TC v5e/v6e.
            dimension_semantics=("parallel",),
        ),
    )(x, w_t, bias2d)

    return out_flat.reshape(B, H, W)


def _reference(batch_indices, emb_table, fc_weight, fc_bias, target_size):
    """Pure-JAX reference mirroring the PyTorch module exactly (f32)."""
    H, W = target_size
    x = emb_table[batch_indices]                                            # (B, E)
    y = jnp.dot(x, fc_weight.T, precision=lax.Precision.HIGHEST) + fc_bias  # (B, H*W)
    y = jnp.maximum(y, 0.0)
    return y.reshape(-1, H, W)


if __name__ == "__main__":
    key = jax.random.PRNGKey(0)
    k1, k2, k3, k4 = jax.random.split(key, 4)

    # Small shapes consistent with the module defaults.
    max_batches = 16
    embedding_dim = 64
    target_size = (128, 128)
    batch = 8

    emb_table = jax.random.normal(k1, (max_batches, embedding_dim), jnp.float32)
    fc_weight = 0.05 * jax.random.normal(
        k2, (target_size[0] * target_size[1], embedding_dim), jnp.float32)
    fc_bias = 0.05 * jax.random.normal(
        k3, (target_size[0] * target_size[1],), jnp.float32)
    batch_indices = jax.random.randint(k4, (batch,), 0, max_batches, jnp.int32)

    # One-time parameter prep (pre-transpose + bf16 cast of the weight).
    params = prepare_text2vec_params(emb_table, fc_weight, fc_bias)
    params = jax.tree_util.tree_map(jax.block_until_ready, params)

    out = text2vec_forward(batch_indices, params, target_size)
    out = jax.block_until_ready(out)

    ref = _reference(batch_indices, emb_table, fc_weight, fc_bias, target_size)
    assert out.shape == (batch, target_size[0], target_size[1]), out.shape
    # bf16 weight/activation stream with f32 accumulation; K=64 contraction
    # stays comfortably within this tolerance vs. the HIGHEST-precision ref.
    assert jnp.allclose(out, ref, atol=2e-2, rtol=2e-2), (
        "mismatch vs reference: max abs diff = %f" % float(jnp.max(jnp.abs(out - ref))))

    print("KERNEL_OK")
</pallas_src>

<mosaic_0001>
module attributes {stable_mosaic.version = 11 : i64} {
  func.func @_text2vec_kernel(%arg0: i32, %arg1: memref<8x64xbf16, #tpu.memory_space<vmem>>, %arg2: memref<64x8192xbf16, #tpu.memory_space<vmem>>, %arg3: memref<1x8192xf32, #tpu.memory_space<vmem>>, %arg4: memref<8x8192xf32, #tpu.memory_space<vmem>>) attributes {dimension_semantics = [#tpu.dimension_semantics<parallel>], iteration_bounds = array<i64: 2>, scalar_prefetch = 0 : i64, scratch_operands = 0 : i64, tpu.core_type = #tpu.core_type<tc>, window_params = [{pipeline_mode = #tpu.pipeline_mode<synchronous>, transform_indices = @transform_0, window_bounds = array<i64: 8, 64>}, {transform_indices = @transform_1, window_bounds = array<i64: 64, 8192>}, {transform_indices = @transform_2, window_bounds = array<i64: 1, 8192>}, {transform_indices = @transform_3, window_bounds = array<i64: 8, 8192>}]} {
    %c0 = arith.constant 0 : index
    %c0_0 = arith.constant 0 : index
    %0 = vector.load %arg1[%c0, %c0_0] : memref<8x64xbf16, #tpu.memory_space<vmem>>, vector<8x64xbf16>
    %c0_1 = arith.constant 0 : index
    %c0_2 = arith.constant 0 : index
    %1 = vector.load %arg2[%c0_1, %c0_2] : memref<64x8192xbf16, #tpu.memory_space<vmem>>, vector<64x8192xbf16>
    %cst = arith.constant dense<0.000000e+00> : vector<8x8192xf32>
    %2 = tpu.matmul %0, %1, %cst {dimension_numbers = #tpu.dot_dimension_numbers<[1], [0], [0], [1], [0, 0, 1, 1], [], []>} : vector<8x64xbf16>, vector<64x8192xbf16>, vector<8x8192xf32> -> vector<8x8192xf32>
    %c0_3 = arith.constant 0 : index
    %c0_4 = arith.constant 0 : index
    %3 = vector.load %arg3[%c0_3, %c0_4] : memref<1x8192xf32, #tpu.memory_space<vmem>>, vector<1x8192xf32>
    %4 = vector.broadcast %3 : vector<1x8192xf32> to vector<8x8192xf32>
    %5 = arith.addf %2, %4 : vector<8x8192xf32>
    %cst_5 = arith.constant 0.000000e+00 : f32
    %6 = vector.broadcast %cst_5 : f32 to vector<8x8192xf32>
    %7 = arith.maximumf %5, %6 : vector<8x8192xf32>
    %c0_6 = arith.constant 0 : index
    %c0_7 = arith.constant 0 : index
    %8 = vector.load %arg4[%c0_6, %c0_7] : memref<8x8192xf32, #tpu.memory_space<vmem>>, vector<8x8192xf32>
    tpu.vector_store %arg4[%c0_6, %c0_7], %7 {strides = array<i32>} : memref<8x8192xf32, #tpu.memory_space<vmem>>, vector<8x8192xf32>,
    return
  }
  func.func @transform_0(%arg0: i32) -> (i32, i32) {
    %c0_i32 = arith.constant 0 : i32
    %c0_i32_0 = arith.constant 0 : i32
    %c0_i32_1 = arith.constant 0 : i32
    return %c0_i32, %c0_i32_0 : i32, i32
  }
  func.func @transform_1(%arg0: i32) -> (i32, i32) {
    %c0_i32 = arith.constant 0 : i32
    %c0_i32_0 = arith.constant 0 : i32
    return %c0_i32, %arg0 : i32, i32
  }
  func.func @transform_2(%arg0: i32) -> (i32, i32) {
    %c0_i32 = arith.constant 0 : i32
    %c0_i32_0 = arith.constant 0 : i32
    return %c0_i32, %arg0 : i32, i32
  }
  func.func @transform_3(%arg0: i32) -> (i32, i32) {
    %c0_i32 = arith.constant 0 : i32
    %c0_i32_0 = arith.constant 0 : i32
    return %c0_i32, %arg0 : i32, i32
  }
}

</mosaic_0001>

<llo_original>
// kernel: text2vec_forward.1
$region0: #{text2vec_forward.1}
  #allocation0 [shape = 'u32[]', space=smem, size = 0x4, offset = 0x4, fixed_abs, tag = 'smem constant byte address 0x4 - core index']
  #allocation1 [shape = 'u32[72,128]{1,0:T(1,128)}', space=vmem, size = 0x9000, scoped, tag = 'internal scratch']
  %s0 = inlined_call_operand.vmem [shape: bf16[8,64], index: 0, kind: input, shape index: {}]
  %s1 = inlined_call_operand.hbm [shape: bf16[64,16384], index: 1, kind: input, shape index: {}]
  %s2 = inlined_call_operand.hbm [shape: f32[1,16384], index: 2, kind: input, shape index: {}]
  %s3 = inlined_call_operand.vmem [shape: f32[8,16384], index: 3, kind: output, shape index: {}]
  %s4 = sld [smem:[#allocation0]]
  $region53: #{text2vec_forward.1} parent=0
    _
  %s6 = ssub.s32 1, %s4
  %s7 = scalar_select 0, %s6, %s4
  $region1: #{text2vec_forward.1} parent=0
    #allocation2 [shape = 'u8[2097152]{0}', space=vmem, size = 0x200000, scoped, tag = 'input window, operand 1']
    #allocation3 [shape = 's32[2]{0}', space=sflag, size = 0x8, scoped, tag = 'scoped memory for text2vec_forward.1']
    #allocation4 [shape = 'u8[65536]{0}', space=vmem, size = 0x10000, scoped, tag = 'input window, operand 2']
    #allocation5 [shape = 's32[2]{0}', space=sflag, size = 0x8, scoped, tag = 'scoped memory for text2vec_forward.1']
    %8 = vsyncpa [#allocation3], 0
    %s9 = scalar_lea.sflag [#allocation3], 1
    %10 = vsyncpa %s9, 0
    %11 = vsyncpa [#allocation5], 0
    %s12 = scalar_lea.sflag [#allocation5], 1
    %13 = vsyncpa %s12, 0
    loop: start=0, step=1, limit=4
    $region2: #{text2vec_forward.1} parent=1 // loop_pre_header
      _
    $region3: #{text2vec_forward.1} parent=1 // loop_header
      %s15 = sphi 0, %s19
      %p16 = scmp.ge.s32.totalorder %s15, 4
      %s23 = sphi 0, %s23
      %s25 = sphi 0, %s23
      %s26 = sphi 0, %s25
      %s40 = sphi 0, %s26
      %s46 = sphi 0, %s48
      %s49 = sphi 0, %s46
      %s50 = sphi 0, %s49
      %s66 = sphi 0, %s50
      %s72 = sphi 0, %s74
      %s75 = sphi 0, %s72
      %s76 = sphi 0, %s75
      %s92 = sphi 0, %s76
      %s98 = sphi 0, %s100
      %s101 = sphi 0, %s98
      %s102 = sphi 0, %s101
      %s118 = sphi 0, %s102
    $region4: #{text2vec_forward.1} parent=1 // loop_header_branch
      %18 = sbr.rel (%p16) target = $region8
    $region5: #{text2vec_forward.1} parent=1 // loop_body
      %s20 = ssub.s32 %s15, 1
      %s21 = ssub.s32 %s15, 2
      %s22 = sadd.s32 %s15, 1
      %s24 = sadd.s32 %s23, 1
      %p27 = scmp.eq.s32.totalorder %s15, 1
      %p28 = scmp.ne.s32.totalorder %s23, %s25
      %p29 = scmp.eq.s32.totalorder %s15, 0
      %p30 = por %p28, %p29
      %p31 = scmp.ne.s32.totalorder %s23, %s25
      %p32 = scmp.eq.s32.totalorder %s20, 1
      %p33 = por %p31, %p32
      %p34 = scmp.ne.s32.totalorder %s25, %s26
      %p35 = scmp.eq.s32.totalorder %s20, 0
      %p36 = por %p34, %p35
      %p37 = scmp.ne.s32.totalorder %s25, %s26
      %p38 = scmp.eq.s32.totalorder %s21, 1
      %p39 = por %p37, %p38
      %p41 = scmp.ne.s32.totalorder %s26, %s40
      %p42 = scmp.eq.s32.totalorder %s21, 0
      %p43 = por %p41, %p42
      %s44 = ssub.s32 %s15, %s22
      %p45 = scmp.eq.s32.totalorder %s44, 0
      %s47 = sadd.s32 %s46, 1
      %s48 = scalar_select %p45, %s46, %s47
      %p51 = pneg %p45
      %p52 = scmp.eq.s32.totalorder %s15, 1
      %p53 = por %p51, %p52
      %p54 = scmp.ne.s32.totalorder %s46, %s49
      %p55 = scmp.eq.s32.totalorder %s15, 0
      %p56 = por %p54, %p55
      %p57 = scmp.ne.s32.totalorder %s46, %s49
      %p58 = scmp.eq.s32.totalorder %s20, 1
      %p59 = por %p57, %p58
      %p60 = scmp.ne.s32.totalorder %s49, %s50
      %p61 = scmp.eq.s32.totalorder %s20, 0
      %p62 = por %p60, %p61
      %p63 = scmp.ne.s32.totalorder %s49, %s50
      %p64 = scmp.eq.s32.totalorder %s21, 1
      %p65 = por %p63, %p64
      %p67 = scmp.ne.s32.totalorder %s50, %s66
      %p68 = scmp.eq.s32.totalorder %s21, 0
      %p69 = por %p67, %p68
      %s70 = ssub.s32 %s15, %s22
      %p71 = scmp.eq.s32.totalorder %s70, 0
      %s73 = sadd.s32 %s72, 1
      %s74 = scalar_select %p71, %s72, %s73
      %p77 = pneg %p71
      %p78 = scmp.eq.s32.totalorder %s15, 1
      %p79 = por %p77, %p78
      %p80 = scmp.ne.s32.totalorder %s72, %s75
      %p81 = scmp.eq.s32.totalorder %s15, 0
      %p82 = por %p80, %p81
      %p83 = scmp.ne.s32.totalorder %s72, %s75
      %p84 = scmp.eq.s32.totalorder %s20, 1
      %p85 = por %p83, %p84
      %p86 = scmp.ne.s32.totalorder %s75, %s76
      %p87 = scmp.eq.s32.totalorder %s20, 0
      %p88 = por %p86, %p87
      %p89 = scmp.ne.s32.totalorder %s75, %s76
      %p90 = scmp.eq.s32.totalorder %s21, 1
      %p91 = por %p89, %p90
      %p93 = scmp.ne.s32.totalorder %s76, %s92
      %p94 = scmp.eq.s32.totalorder %s21, 0
      %p95 = por %p93, %p94
      %s96 = ssub.s32 %s15, %s22
      %p97 = scmp.eq.s32.totalorder %s96, 0
      %s99 = sadd.s32 %s98, 1
      %s100 = scalar_select %p97, %s98, %s99
      %p103 = pneg %p97
      %p104 = scmp.eq.s32.totalorder %s15, 1
      %p105 = por %p103, %p104
      %p106 = scmp.ne.s32.totalorder %s98, %s101
      %p107 = scmp.eq.s32.totalorder %s15, 0
      %p108 = por %p106, %p107
      %p109 = scmp.ne.s32.totalorder %s98, %s101
      %p110 = scmp.eq.s32.totalorder %s20, 1
      %p111 = por %p109, %p110
      %p112 = scmp.ne.s32.totalorder %s101, %s102
      %p113 = scmp.eq.s32.totalorder %s20, 0
      %p114 = por %p112, %p113
      %p115 = scmp.ne.s32.totalorder %s101, %s102
      %p116 = scmp.eq.s32.totalorder %s21, 1
      %p117 = por %p115, %p116
      %p119 = scmp.ne.s32.totalorder %s102, %s118
      %p120 = scmp.eq.s32.totalorder %s21, 0
      %p121 = por %p119, %p120
      %p122 = scmp.le.s32.totalorder 1, %s15
      %p123 = scmp.lt.s32.totalorder %s15, 3
      %p124 = pnand %p122, %p123
      %p125 = pneg %p124
      // Predicated region
      $region9: #{text2vec_forward.1} parent=5 // pred_check
        _
      $region10: #{text2vec_forward.1} parent=5 // pred_check_branch
        %127 = sbr.rel (%p124) target = $region12
      $region11: #{text2vec_forward.1} parent=5 // pred_region
        %s128 = ssub.s32 %s15, 1
        // Predicated region
        $region13: #{text2vec_forward.1} parent=11 // pred_check
          %p129 = pneg %p36
        $region14: #{text2vec_forward.1} parent=11 // pred_check_branch
          %131 = sbr.rel (%p129) target = $region16
        $region15: #{text2vec_forward.1} parent=11 // pred_region
          _
        $region16: #{text2vec_forward.1} parent=11 // pred_fallthru
          _
      $region12: #{text2vec_forward.1} parent=5 // pred_fallthru
        _
      %p132 = scmp.lt.s32.totalorder %s15, 2
      // Predicated region
      $region17: #{text2vec_forward.1} parent=5 // pred_check
        %p133 = pneg %p132
      $region18: #{text2vec_forward.1} parent=5 // pred_check_branch
        %135 = sbr.rel (%p133) target = $region20
      $region19: #{text2vec_forward.1} parent=5 // pred_region
        // Predicated region
        $region21: #{text2vec_forward.1} parent=19 // pred_check
          %p136 = pneg %p56
        $region22: #{text2vec_forward.1} parent=19 // pred_check_branch
          %138 = sbr.rel (%p136) target = $region24
        $region23: #{text2vec_forward.1} parent=19 // pred_region
          %s139 = sand.u32 %s46, 1
          %s140 = scalar_lea.sflag [#allocation3], %s139
          %s141 = sand.u32 %s46, 1
          %s142 = smul.addr %s141, 2048
          %s143 = scalar_lea.vmem [#allocation2], %s142
          %s144 = smul.u32 64, %s15
          %146 = vsyncadd %s140, 0
          %s147 = smul.addr %s144, 4
          %s148 = scalar_lea.hbm %s1, %s147
          %s149 = sshll.u32 %s148, 4
          %s150 = int_to_ptr.hbm [resolvable:$true] %s149
          %s151 = sshll.u32 %s143, 4
          %s152 = int_to_ptr.vmem [resolvable:$true] %s151
          %157 = dma.hbm_to_vmem [thread:$0]  %s150, 32768, %s152, %s140, 8192, 4096, 256
        $region24: #{text2vec_forward.1} parent=19 // pred_fallthru
          _
        // Predicated region
        $region25: #{text2vec_forward.1} parent=19 // pred_check
          %p158 = pneg %p82
        $region26: #{text2vec_forward.1} parent=19 // pred_check_branch
          %160 = sbr.rel (%p158) target = $region28
        $region27: #{text2vec_forward.1} parent=19 // pred_region
          %s161 = sand.u32 %s72, 1
          %s162 = scalar_lea.sflag [#allocation5], %s161
          %s163 = sand.u32 %s72, 1
          %s164 = smul.addr %s163, 64
          %s165 = scalar_lea.vmem [#allocation4], %s164
          %s166 = smul.u32 64, %s15
          %168 = vsyncadd %s162, 0
          %s169 = scalar_lea.hbm %s2, %s166
          %s171 = sshll.u32 %s169, 4
          %s172 = int_to_ptr.hbm [resolvable:$true] %s171
          %s173 = sshll.u32 %s165, 4
          %s174 = int_to_ptr.vmem [resolvable:$true] %s173
          %176 = dma.hbm_to_vmem [thread:$0]  %s172, 1024, %s174, %s162
        $region28: #{text2vec_forward.1} parent=19 // pred_fallthru
          _
      $region20: #{text2vec_forward.1} parent=5 // pred_fallthru
        _
      %p177 = scmp.le.s32.totalorder 1, %s15
      %p178 = scmp.lt.s32.totalorder %s15, 3
      %p179 = pnand %p177, %p178
      %p180 = pneg %p179
      // Predicated region
      $region29: #{text2vec_forward.1} parent=5 // pred_check
        _
      $region30: #{text2vec_forward.1} parent=5 // pred_check_branch
        %182 = sbr.rel (%p179) target = $region32
      $region31: #{text2vec_forward.1} parent=5 // pred_region
        %s183 = ssub.s32 %s15, 1
        %s184 = sand.u32 %s49, 1
        %s185 = scalar_lea.sflag [#allocation3], %s184
        %s186 = sand.u32 %s49, 1
        %s187 = smul.addr %s186, 2048
        %s188 = scalar_lea.vmem [#allocation2], %s187
        // Predicated region
        $region33: #{text2vec_forward.1} parent=31 // pred_check
          %p189 = pneg %p62
        $region34: #{text2vec_forward.1} parent=31 // pred_check_branch
          %191 = sbr.rel (%p189) target = $region36
        $region35: #{text2vec_forward.1} parent=31 // pred_region
          %193 = dma.done %s185, 32768
        $region36: #{text2vec_forward.1} parent=31 // pred_fallthru
          _
        %s194 = sand.u32 %s75, 1
        %s195 = scalar_lea.sflag [#allocation5], %s194
        %s196 = sand.u32 %s75, 1
        %s197 = smul.addr %s196, 64
        %s198 = scalar_lea.vmem [#allocation4], %s197
        // Predicated region
        $region37: #{text2vec_forward.1} parent=31 // pred_check
          %p199 = pneg %p88
        $region38: #{text2vec_forward.1} parent=31 // pred_check_branch
          %201 = sbr.rel (%p199) target = $region40
        $region39: #{text2vec_forward.1} parent=31 // pred_region
          %203 = dma.done %s195, 1024
        $region40: #{text2vec_forward.1} parent=31 // pred_fallthru
          _
        %p204 = pneg %p36
        %p205 = pneg %p33
        %s206 = sand.u32 %s49, 1
        %s207 = scalar_lea.sflag [#allocation3], %s206
        %s208 = sand.u32 %s49, 1
        %s209 = smul.addr %s208, 2048
        %s210 = scalar_lea.vmem [#allocation2], %s209
        %p211 = pneg %p62
        %p212 = pneg %p59
        %s213 = sand.u32 %s75, 1
        %s214 = scalar_lea.sflag [#allocation5], %s213
        %s215 = sand.u32 %s75, 1
        %s216 = smul.addr %s215, 64
        %s217 = scalar_lea.vmem [#allocation4], %s216
        %p218 = pneg %p88
        %p219 = pneg %p85
        %p220 = pneg %p114
        %p221 = pneg %p111
        %s222 = smul.u32 64, %s20
        %p223 = scmp.lt.s32.totalorder %s222, 127
        %s224 = scalar_select %p223, %s222, 127
        %s225 = smul.addr %s224, 8
        %s226 = scalar_lea.vmem %s3, %s225
        %s227 = smul.u32 64, %s20
        %s228 = smul.u32 64, %s20
        %s229 = smul.u32 64, %s20
        %p230 = scmp.lt.s32.totalorder %s229, 127
        %s231 = scalar_select %p230, %s229, 127
        %s232 = smul.addr %s231, 8
        %s233 = scalar_lea.vmem %s3, %s232
        %s234 = smul.u32 64, %s20
        %v236 = vld [vmem:[%s0] sm:$0xf]
        %v237 = vld [vmem:[%s188] sm:$0xff]
        %v238 = vld [vmem:[%s188 + $0x8] sm:$0xff]
        %v239 = vld [vmem:[%s188 + $0x10] sm:$0xff]
        %v240 = vld [vmem:[%s188 + $0x18] sm:$0xff]
        %v241 = vld [vmem:[%s188 + $0x20] sm:$0xff]
        %v242 = vld [vmem:[%s188 + $0x28] sm:$0xff]
        %v243 = vld [vmem:[%s188 + $0x30] sm:$0xff]
        %v244 = vld [vmem:[%s188 + $0x38] sm:$0xff]
        %v245 = vld [vmem:[%s188 + $0x40] sm:$0xff]
        %v246 = vld [vmem:[%s188 + $0x48] sm:$0xff]
        %v247 = vld [vmem:[%s188 + $0x50] sm:$0xff]
        %v248 = vld [vmem:[%s188 + $0x58] sm:$0xff]
        %v249 = vld [vmem:[%s188 + $0x60] sm:$0xff]
        %v250 = vld [vmem:[%s188 + $0x68] sm:$0xff]
        %v251 = vld [vmem:[%s188 + $0x70] sm:$0xff]
        %v252 = vld [vmem:[%s188 + $0x78] sm:$0xff]
        %v253 = vld [vmem:[%s188 + $0x80] sm:$0xff]
        %v254 = vld [vmem:[%s188 + $0x88] sm:$0xff]
        %v255 = vld [vmem:[%s188 + $0x90] sm:$0xff]
        %v256 = vld [vmem:[%s188 + $0x98] sm:$0xff]
        %v257 = vld [vmem:[%s188 + $0xa0] sm:$0xff]
        %v258 = vld [vmem:[%s188 + $0xa8] sm:$0xff]
        %v259 = vld [vmem:[%s188 + $0xb0] sm:$0xff]
        %v260 = vld [vmem:[%s188 + $0xb8] sm:$0xff]
        %v261 = vld [vmem:[%s188 + $0xc0] sm:$0xff]
        %v262 = vld [vmem:[%s188 + $0xc8] sm:$0xff]
        %v263 = vld [vmem:[%s188 + $0xd0] sm:$0xff]
        %v264 = vld [vmem:[%s188 + $0xd8] sm:$0xff]
        %v265 = vld [vmem:[%s188 + $0xe0] sm:$0xff]
        %v266 = vld [vmem:[%s188 + $0xe8] sm:$0xff]
        %v267 = vld [vmem:[%s188 + $0xf0] sm:$0xff]
        %v268 = vld [vmem:[%s188 + $0xf8] sm:$0xff]
        %v269 = vld [vmem:[%s188 + $0x100] sm:$0xff]
        %v270 = vld [vmem:[%s188 + $0x108] sm:$0xff]
        %v271 = vld [vmem:[%s188 + $0x110] sm:$0xff]
        %v272 = vld [vmem:[%s188 + $0x118] sm:$0xff]
        %v273 = vld [vmem:[%s188 + $0x120] sm:$0xff]
        %v274 = vld [vmem:[%s188 + $0x128] sm:$0xff]
        %v275 = vld [vmem:[%s188 + $0x130] sm:$0xff]
        %v276 = vld [vmem:[%s188 + $0x138] sm:$0xff]
        %v277 = vld [vmem:[%s188 + $0x140] sm:$0xff]
        %v278 = vld [vmem:[%s188 + $0x148] sm:$0xff]
        %v279 = vld [vmem:[%s188 + $0x150] sm:$0xff]
        %v280 = vld [vmem:[%s188 + $0x158] sm:$0xff]
        %v281 = vld [vmem:[%s188 + $0x160] sm:$0xff]
        %v282 = vld [vmem:[%s188 + $0x168] sm:$0xff]
        %v283 = vld [vmem:[%s188 + $0x170] sm:$0xff]
        %v284 = vld [vmem:[%s188 + $0x178] sm:$0xff]
        %v285 = vld [vmem:[%s188 + $0x180] sm:$0xff]
        %v286 = vld [vmem:[%s188 + $0x188] sm:$0xff]
        %v287 = vld [vmem:[%s188 + $0x190] sm:$0xff]
        %v288 = vld [vmem:[%s188 + $0x198] sm:$0xff]
        %v289 = vld [vmem:[%s188 + $0x1a0] sm:$0xff]
        %v290 = vld [vmem:[%s188 + $0x1a8] sm:$0xff]
        %v291 = vld [vmem:[%s188 + $0x1b0] sm:$0xff]
        %v292 = vld [vmem:[%s188 + $0x1b8] sm:$0xff]
        %v293 = vld [vmem:[%s188 + $0x1c0] sm:$0xff]
        %v294 = vld [vmem:[%s188 + $0x1c8] sm:$0xff]
        %v295 = vld [vmem:[%s188 + $0x1d0] sm:$0xff]
        %v296 = vld [vmem:[%s188 + $0x1d8] sm:$0xff]
        %v297 = vld [vmem:[%s188 + $0x1e0] sm:$0xff]
        %v298 = vld [vmem:[%s188 + $0x1e8] sm:$0xff]
        %v299 = vld [vmem:[%s188 + $0x1f0] sm:$0xff]
        %v300 = vld [vmem:[%s188 + $0x1f8] sm:$0xff]
        %v301 = vld [vmem:[%s188 + $0x200] sm:$0xff]
        %v302 = vld [vmem:[%s188 + $0x208] sm:$0xff]
        %v303 = vld [vmem:[%s188 + $0x210] sm:$0xff]
        %v304 = vld [vmem:[%s188 + $0x218] sm:$0xff]
        %v305 = vld [vmem:[%s188 + $0x220] sm:$0xff]
        %v306 = vld [vmem:[%s188 + $0x228] sm:$0xff]
        %v307 = vld [vmem:[%s188 + $0x230] sm:$0xff]
        %v308 = vld [vmem:[%s188 + $0x238] sm:$0xff]
        %v309 = vld [vmem:[%s188 + $0x240] sm:$0xff]
        %v310 = vld [vmem:[%s188 + $0x248] sm:$0xff]
        %v311 = vld [vmem:[%s188 + $0x250] sm:$0xff]
        %v312 = vld [vmem:[%s188 + $0x258] sm:$0xff]
        %v313 = vld [vmem:[%s188 + $0x260] sm:$0xff]
        %v314 = vld [vmem:[%s188 + $0x268] sm:$0xff]
        %v315 = vld [vmem:[%s188 + $0x270] sm:$0xff]
        %v316 = vld [vmem:[%s188 + $0x278] sm:$0xff]
        %v317 = vld [vmem:[%s188 + $0x280] sm:$0xff]
        %v318 = vld [vmem:[%s188 + $0x288] sm:$0xff]
        %v319 = vld [vmem:[%s188 + $0x290] sm:$0xff]
        %v320 = vld [vmem:[%s188 + $0x298] sm:$0xff]
        %v321 = vld [vmem:[%s188 + $0x2a0] sm:$0xff]
        %v322 = vld [vmem:[%s188 + $0x2a8] sm:$0xff]
        %v323 = vld [vmem:[%s188 + $0x2b0] sm:$0xff]
        %v324 = vld [vmem:[%s188 + $0x2b8] sm:$0xff]
        %v325 = vld [vmem:[%s188 + $0x2c0] sm:$0xff]
        %v326 = vld [vmem:[%s188 + $0x2c8] sm:$0xff]
        %v327 = vld [vmem:[%s188 + $0x2d0] sm:$0xff]
        %v328 = vld [vmem:[%s188 + $0x2d8] sm:$0xff]
        %v329 = vld [vmem:[%s188 + $0x2e0] sm:$0xff]
        %v330 = vld [vmem:[%s188 + $0x2e8] sm:$0xff]
        %v331 = vld [vmem:[%s188 + $0x2f0] sm:$0xff]
        %v332 = vld [vmem:[%s188 + $0x2f8] sm:$0xff]
        %v333 = vld [vmem:[%s188 + $0x300] sm:$0xff]
        %v334 = vld [vmem:[%s188 + $0x308] sm:$0xff]
        %v335 = vld [vmem:[%s188 + $0x310] sm:$0xff]
        %v336 = vld [vmem:[%s188 + $0x318] sm:$0xff]
        %v337 = vld [vmem:[%s188 + $0x320] sm:$0xff]
        %v338 = vld [vmem:[%s188 + $0x328] sm:$0xff]
        %v339 = vld [vmem:[%s188 + $0x330] sm:$0xff]
        %v340 = vld [vmem:[%s188 + $0x338] sm:$0xff]
        %v341 = vld [vmem:[%s188 + $0x340] sm:$0xff]
        %v342 = vld [vmem:[%s188 + $0x348] sm:$0xff]
        %v343 = vld [vmem:[%s188 + $0x350] sm:$0xff]
        %v344 = vld [vmem:[%s188 + $0x358] sm:$0xff]
        %v345 = vld [vmem:[%s188 + $0x360] sm:$0xff]
        %v346 = vld [vmem:[%s188 + $0x368] sm:$0xff]
        %v347 = vld [vmem:[%s188 + $0x370] sm:$0xff]
        %v348 = vld [vmem:[%s188 + $0x378] sm:$0xff]
        %v349 = vld [vmem:[%s188 + $0x380] sm:$0xff]
        %v350 = vld [vmem:[%s188 + $0x388] sm:$0xff]
        %v351 = vld [vmem:[%s188 + $0x390] sm:$0xff]
        %v352 = vld [vmem:[%s188 + $0x398] sm:$0xff]
        %v353 = vld [vmem:[%s188 + $0x3a0] sm:$0xff]
        %v354 = vld [vmem:[%s188 + $0x3a8] sm:$0xff]
        %v355 = vld [vmem:[%s188 + $0x3b0] sm:$0xff]
        %v356 = vld [vmem:[%s188 + $0x3b8] sm:$0xff]
        %v357 = vld [vmem:[%s188 + $0x3c0] sm:$0xff]
        %v358 = vld [vmem:[%s188 + $0x3c8] sm:$0xff]
        %v359 = vld [vmem:[%s188 + $0x3d0] sm:$0xff]
        %v360 = vld [vmem:[%s188 + $0x3d8] sm:$0xff]
        %v361 = vld [vmem:[%s188 + $0x3e0] sm:$0xff]
        %v362 = vld [vmem:[%s188 + $0x3e8] sm:$0xff]
        %v363 = vld [vmem:[%s188 + $0x3f0] sm:$0xff]
        %v364 = vld [vmem:[%s188 + $0x3f8] sm:$0xff]
        %v365 = vld [vmem:[%s188 + $0x400] sm:$0xff]
        %v366 = vld [vmem:[%s188 + $0x408] sm:$0xff]
        %v367 = vld [vmem:[%s188 + $0x410] sm:$0xff]
        %v368 = vld [vmem:[%s188 + $0x418] sm:$0xff]
        %v369 = vld [vmem:[%s188 + $0x420] sm:$0xff]
        %v370 = vld [vmem:[%s188 + $0x428] sm:$0xff]
        %v371 = vld [vmem:[%s188 + $0x430] sm:$0xff]
        %v372 = vld [vmem:[%s188 + $0x438] sm:$0xff]
        %v373 = vld [vmem:[%s188 + $0x440] sm:$0xff]
        %v374 = vld [vmem:[%s188 + $0x448] sm:$0xff]
        %v375 = vld [vmem:[%s188 + $0x450] sm:$0xff]
        %v376 = vld [vmem:[%s188 + $0x458] sm:$0xff]
        %v377 = vld [vmem:[%s188 + $0x460] sm:$0xff]
        %v378 = vld [vmem:[%s188 + $0x468] sm:$0xff]
        %v379 = vld [vmem:[%s188 + $0x470] sm:$0xff]
        %v380 = vld [vmem:[%s188 + $0x478] sm:$0xff]
        %v381 = vld [vmem:[%s188 + $0x480] sm:$0xff]
        %v382 = vld [vmem:[%s188 + $0x488] sm:$0xff]
        %v383 = vld [vmem:[%s188 + $0x490] sm:$0xff]
        %v384 = vld [vmem:[%s188 + $0x498] sm:$0xff]
        %v385 = vld [vmem:[%s188 + $0x4a0] sm:$0xff]
        %v386 = vld [vmem:[%s188 + $0x4a8] sm:$0xff]
        %v387 = vld [vmem:[%s188 + $0x4b0] sm:$0xff]
        %v388 = vld [vmem:[%s188 + $0x4b8] sm:$0xff]
        %v389 = vld [vmem:[%s188 + $0x4c0] sm:$0xff]
        %v390 = vld [vmem:[%s188 + $0x4c8] sm:$0xff]
        %v391 = vld [vmem:[%s188 + $0x4d0] sm:$0xff]
        %v392 = vld [vmem:[%s188 + $0x4d8] sm:$0xff]
        %v393 = vld [vmem:[%s188 + $0x4e0] sm:$0xff]
        %v394 = vld [vmem:[%s188 + $0x4e8] sm:$0xff]
        %v395 = vld [vmem:[%s188 + $0x4f0] sm:$0xff]
        %v396 = vld [vmem:[%s188 + $0x4f8] sm:$0xff]
        %v397 = vld [vmem:[%s188 + $0x500] sm:$0xff]
        %v398 = vld [vmem:[%s188 + $0x508] sm:$0xff]
        %v399 = vld [vmem:[%s188 + $0x510] sm:$0xff]
        %v400 = vld [vmem:[%s188 + $0x518] sm:$0xff]
        %v401 = vld [vmem:[%s188 + $0x520] sm:$0xff]
        %v402 = vld [vmem:[%s188 + $0x528] sm:$0xff]
        %v403 = vld [vmem:[%s188 + $0x530] sm:$0xff]
        %v404 = vld [vmem:[%s188 + $0x538] sm:$0xff]
        %v405 = vld [vmem:[%s188 + $0x540] sm:$0xff]
        %v406 = vld [vmem:[%s188 + $0x548] sm:$0xff]
        %v407 = vld [vmem:[%s188 + $0x550] sm:$0xff]
        %v408 = vld [vmem:[%s188 + $0x558] sm:$0xff]
        %v409 = vld [vmem:[%s188 + $0x560] sm:$0xff]
        %v410 = vld [vmem:[%s188 + $0x568] sm:$0xff]
        %v411 = vld [vmem:[%s188 + $0x570] sm:$0xff]
        %v412 = vld [vmem:[%s188 + $0x578] sm:$0xff]
        %v413 = vld [vmem:[%s188 + $0x580] sm:$0xff]
        %v414 = vld [vmem:[%s188 + $0x588] sm:$0xff]
        %v415 = vld [vmem:[%s188 + $0x590] sm:$0xff]
        %v416 = vld [vmem:[%s188 + $0x598] sm:$0xff]
        %v417 = vld [vmem:[%s188 + $0x5a0] sm:$0xff]
        %v418 = vld [vmem:[%s188 + $0x5a8] sm:$0xff]
        %v419 = vld [vmem:[%s188 + $0x5b0] sm:$0xff]
        %v420 = vld [vmem:[%s188 + $0x5b8] sm:$0xff]
        %v421 = vld [vmem:[%s188 + $0x5c0] sm:$0xff]
        %v422 = vld [vmem:[%s188 + $0x5c8] sm:$0xff]
        %v423 = vld [vmem:[%s188 + $0x5d0] sm:$0xff]
        %v424 = vld [vmem:[%s188 + $0x5d8] sm:$0xff]
        %v425 = vld [vmem:[%s188 + $0x5e0] sm:$0xff]
        %v426 = vld [vmem:[%s188 + $0x5e8] sm:$0xff]
        %v427 = vld [vmem:[%s188 + $0x5f0] sm:$0xff]
        %v428 = vld [vmem:[%s188 + $0x5f8] sm:$0xff]
        %v429 = vld [vmem:[%s188 + $0x600] sm:$0xff]
        %v430 = vld [vmem:[%s188 + $0x608] sm:$0xff]
        %v431 = vld [vmem:[%s188 + $0x610] sm:$0xff]
        %v432 = vld [vmem:[%s188 + $0x618] sm:$0xff]
        %v433 = vld [vmem:[%s188 + $0x620] sm:$0xff]
        %v434 = vld [vmem:[%s188 + $0x628] sm:$0xff]
        %v435 = vld [vmem:[%s188 + $0x630] sm:$0xff]
        %v436 = vld [vmem:[%s188 + $0x638] sm:$0xff]
        %v437 = vld [vmem:[%s188 + $0x640] sm:$0xff]
        %v438 = vld [vmem:[%s188 + $0x648] sm:$0xff]
        %v439 = vld [vmem:[%s188 + $0x650] sm:$0xff]
        %v440 = vld [vmem:[%s188 + $0x658] sm:$0xff]
        %v441 = vld [vmem:[%s188 + $0x660] sm:$0xff]
        %v442 = vld [vmem:[%s188 + $0x668] sm:$0xff]
        %v443 = vld [vmem:[%s188 + $0x670] sm:$0xff]
        %v444 = vld [vmem:[%s188 + $0x678] sm:$0xff]
        %v445 = vld [vmem:[%s188 + $0x680] sm:$0xff]
        %v446 = vld [vmem:[%s188 + $0x688] sm:$0xff]
        %v447 = vld [vmem:[%s188 + $0x690] sm:$0xff]
        %v448 = vld [vmem:[%s188 + $0x698] sm:$0xff]
        %v449 = vld [vmem:[%s188 + $0x6a0] sm:$0xff]
        %v450 = vld [vmem:[%s188 + $0x6a8] sm:$0xff]
        %v451 = vld [vmem:[%s188 + $0x6b0] sm:$0xff]
        %v452 = vld [vmem:[%s188 + $0x6b8] sm:$0xff]
        %v453 = vld [vmem:[%s188 + $0x6c0] sm:$0xff]
        %v454 = vld [vmem:[%s188 + $0x6c8] sm:$0xff]
        %v455 = vld [vmem:[%s188 + $0x6d0] sm:$0xff]
        %v456 = vld [vmem:[%s188 + $0x6d8] sm:$0xff]
        %v457 = vld [vmem:[%s188 + $0x6e0] sm:$0xff]
        %v458 = vld [vmem:[%s188 + $0x6e8] sm:$0xff]
        %v459 = vld [vmem:[%s188 + $0x6f0] sm:$0xff]
        %v460 = vld [vmem:[%s188 + $0x6f8] sm:$0xff]
        %v461 = vld [vmem:[%s188 + $0x700] sm:$0xff]
        %v462 = vld [vmem:[%s188 + $0x708] sm:$0xff]
        %v463 = vld [vmem:[%s188 + $0x710] sm:$0xff]
        %v464 = vld [vmem:[%s188 + $0x718] sm:$0xff]
        %v465 = vld [vmem:[%s188 + $0x720] sm:$0xff]
        %v466 = vld [vmem:[%s188 + $0x728] sm:$0xff]
        %v467 = vld [vmem:[%s188 + $0x730] sm:$0xff]
        %v468 = vld [vmem:[%s188 + $0x738] sm:$0xff]
        %v469 = vld [vmem:[%s188 + $0x740] sm:$0xff]
        %v470 = vld [vmem:[%s188 + $0x748] sm:$0xff]
        %v471 = vld [vmem:[%s188 + $0x750] sm:$0xff]
        %v472 = vld [vmem:[%s188 + $0x758] sm:$0xff]
        %v473 = vld [vmem:[%s188 + $0x760] sm:$0xff]
        %v474 = vld [vmem:[%s188 + $0x768] sm:$0xff]
        %v475 = vld [vmem:[%s188 + $0x770] sm:$0xff]
        %v476 = vld [vmem:[%s188 + $0x778] sm:$0xff]
        %v477 = vld [vmem:[%s188 + $0x780] sm:$0xff]
        %v478 = vld [vmem:[%s188 + $0x788] sm:$0xff]
        %v479 = vld [vmem:[%s188 + $0x790] sm:$0xff]
        %v480 = vld [vmem:[%s188 + $0x798] sm:$0xff]
        %v481 = vld [vmem:[%s188 + $0x7a0] sm:$0xff]
        %v482 = vld [vmem:[%s188 + $0x7a8] sm:$0xff]
        %v483 = vld [vmem:[%s188 + $0x7b0] sm:$0xff]
        %v484 = vld [vmem:[%s188 + $0x7b8] sm:$0xff]
        %v485 = vld [vmem:[%s188 + $0x7c0] sm:$0xff]
        %v486 = vld [vmem:[%s188 + $0x7c8] sm:$0xff]
        %v487 = vld [vmem:[%s188 + $0x7d0] sm:$0xff]
        %v488 = vld [vmem:[%s188 + $0x7d8] sm:$0xff]
        %v489 = vld [vmem:[%s188 + $0x7e0] sm:$0xff]
        %v490 = vld [vmem:[%s188 + $0x7e8] sm:$0xff]
        %v491 = vld [vmem:[%s188 + $0x7f0] sm:$0xff]
        %v492 = vld [vmem:[%s188 + $0x7f8] sm:$0xff]
        %v493 = vld [vmem:[%s198] sm:$0xff]
        %v494 = vld [vmem:[%s198 + $0x8] sm:$0xff]
        %v495 = vld [vmem:[%s198 + $0x10] sm:$0xff]
        %v496 = vld [vmem:[%s198 + $0x18] sm:$0xff]
        %v497 = vld [vmem:[%s198 + $0x20] sm:$0xff]
        %v498 = vld [vmem:[%s198 + $0x28] sm:$0xff]
        %v499 = vld [vmem:[%s198 + $0x30] sm:$0xff]
        %v500 = vld [vmem:[%s198 + $0x38] sm:$0xff]
        %v509 = vperm.slane %v493, 0
        %v510 = vperm.slane %v493, 1
        %v511 = vperm.slane %v493, 2
        %v512 = vperm.slane %v493, 3
        %v513 = vperm.slane %v493, 4
        %v514 = vperm.slane %v493, 5
        %v515 = vperm.slane %v493, 6
        %v516 = vperm.slane %v493, 7
        %v517 = vperm.slane %v494, 0
        %v518 = vperm.slane %v494, 1
        %v519 = vperm.slane %v494, 2
        %v520 = vperm.slane %v494, 3
        %v521 = vperm.slane %v494, 4
        %v522 = vperm.slane %v494, 5
        %v523 = vperm.slane %v494, 6
        %v524 = vperm.slane %v494, 7
        %v525 = vperm.slane %v495, 0
        %v526 = vperm.slane %v495, 1
        %v527 = vperm.slane %v495, 2
        %v528 = vperm.slane %v495, 3
        %v529 = vperm.slane %v495, 4
        %v530 = vperm.slane %v495, 5
        %v531 = vperm.slane %v495, 6
        %v532 = vperm.slane %v495, 7
        %v533 = vperm.slane %v496, 0
        %v534 = vperm.slane %v496, 1
        %v535 = vperm.slane %v496, 2
        %v536 = vperm.slane %v496, 3
        %v537 = vperm.slane %v496, 4
        %v538 = vperm.slane %v496, 5
        %v539 = vperm.slane %v496, 6
        %v540 = vperm.slane %v496, 7
        %v541 = vperm.slane %v497, 0
        %v542 = vperm.slane %v497, 1
        %v543 = vperm.slane %v497, 2
        %v544 = vperm.slane %v497, 3
        %v545 = vperm.slane %v497, 4
        %v546 = vperm.slane %v497, 5
        %v547 = vperm.slane %v497, 6
        %v548 = vperm.slane %v497, 7
        %v549 = vperm.slane %v498, 0
        %v550 = vperm.slane %v498, 1
        %v551 = vperm.slane %v498, 2
        %v552 = vperm.slane %v498, 3
        %v553 = vperm.slane %v498, 4
        %v554 = vperm.slane %v498, 5
        %v555 = vperm.slane %v498, 6
        %v556 = vperm.slane %v498, 7
        %v557 = vperm.slane %v499, 0
        %v558 = vperm.slane %v499, 1
        %v559 = vperm.slane %v499, 2
        %v560 = vperm.slane %v499, 3
        %v561 = vperm.slane %v499, 4
        %v562 = vperm.slane %v499, 5
        %v563 = vperm.slane %v499, 6
        %v564 = vperm.slane %v499, 7
        %v565 = vperm.slane %v500, 0
        %v566 = vperm.slane %v500, 1
        %v567 = vperm.slane %v500, 2
        %v568 = vperm.slane %v500, 3
        %v569 = vperm.slane %v500, 4
        %v570 = vperm.slane %v500, 5
        %v571 = vperm.slane %v500, 6
        %v572 = vperm.slane %v500, 7
        %v893 = vunpack.c.l.b16 %v237
        %v894 = vunpack.c.h.b16 %v237
        %v895 = vunpack.c.l.b16 %v238
        %v896 = vunpack.c.h.b16 %v238
        %v897 = vunpack.c.l.b16 %v239
        %v898 = vunpack.c.h.b16 %v239
        %v899 = vunpack.c.l.b16 %v240
        %v900 = vunpack.c.h.b16 %v240
        %v901 = vunpack.c.l.b16 %v241
        %v902 = vunpack.c.h.b16 %v241
        %v903 = vunpack.c.l.b16 %v242
        %v904 = vunpack.c.h.b16 %v242
        %v905 = vunpack.c.l.b16 %v243
        %v906 = vunpack.c.h.b16 %v243
        %v907 = vunpack.c.l.b16 %v244
        %v908 = vunpack.c.h.b16 %v244
        %v909 = vunpack.c.l.b16 %v245
        %v910 = vunpack.c.h.b16 %v245
        %v911 = vunpack.c.l.b16 %v246
        %v912 = vunpack.c.h.b16 %v246
        %v913 = vunpack.c.l.b16 %v247
        %v914 = vunpack.c.h.b16 %v247
        %v915 = vunpack.c.l.b16 %v248
        %v916 = vunpack.c.h.b16 %v248
        %v917 = vunpack.c.l.b16 %v249
        %v918 = vunpack.c.h.b16 %v249
        %v919 = vunpack.c.l.b16 %v250
        %v920 = vunpack.c.h.b16 %v250
        %v921 = vunpack.c.l.b16 %v251
        %v922 = vunpack.c.h.b16 %v251
        %v923 = vunpack.c.l.b16 %v252
        %v924 = vunpack.c.h.b16 %v252
        %v925 = vunpack.c.l.b16 %v253
        %v926 = vunpack.c.h.b16 %v253
        %v927 = vunpack.c.l.b16 %v254
        %v928 = vunpack.c.h.b16 %v254
        %v929 = vunpack.c.l.b16 %v255
        %v930 = vunpack.c.h.b16 %v255
        %v931 = vunpack.c.l.b16 %v256
        %v932 = vunpack.c.h.b16 %v256
        %v933 = vunpack.c.l.b16 %v257
        %v934 = vunpack.c.h.b16 %v257
        %v935 = vunpack.c.l.b16 %v258
        %v936 = vunpack.c.h.b16 %v258
        %v937 = vunpack.c.l.b16 %v259
        %v938 = vunpack.c.h.b16 %v259
        %v939 = vunpack.c.l.b16 %v260
        %v940 = vunpack.c.h.b16 %v260
        %v941 = vunpack.c.l.b16 %v261
        %v942 = vunpack.c.h.b16 %v261
        %v943 = vunpack.c.l.b16 %v262
        %v944 = vunpack.c.h.b16 %v262
        %v945 = vunpack.c.l.b16 %v263
        %v946 = vunpack.c.h.b16 %v263
        %v947 = vunpack.c.l.b16 %v264
        %v948 = vunpack.c.h.b16 %v264
        %v949 = vunpack.c.l.b16 %v265
        %v950 = vunpack.c.h.b16 %v265
        %v951 = vunpack.c.l.b16 %v266
        %v952 = vunpack.c.h.b16 %v266
        %v953 = vunpack.c.l.b16 %v267
        %v954 = vunpack.c.h.b16 %v267
        %v955 = vunpack.c.l.b16 %v268
        %v956 = vunpack.c.h.b16 %v268
        %v957 = vunpack.c.l.b16 %v269
        %v958 = vunpack.c.h.b16 %v269
        %v959 = vunpack.c.l.b16 %v270
        %v960 = vunpack.c.h.b16 %v270
        %v961 = vunpack.c.l.b16 %v271
        %v962 = vunpack.c.h.b16 %v271
        %v963 = vunpack.c.l.b16 %v272
        %v964 = vunpack.c.h.b16 %v272
        %v965 = vunpack.c.l.b16 %v273
        %v966 = vunpack.c.h.b16 %v273
        %v967 = vunpack.c.l.b16 %v274
        %v968 = vunpack.c.h.b16 %v274
        %v969 = vunpack.c.l.b16 %v275
        %v970 = vunpack.c.h.b16 %v275
        %v971 = vunpack.c.l.b16 %v276
        %v972 = vunpack.c.h.b16 %v276
        %v973 = vunpack.c.l.b16 %v277
        %v974 = vunpack.c.h.b16 %v277
        %v975 = vunpack.c.l.b16 %v278
        %v976 = vunpack.c.h.b16 %v278
        %v977 = vunpack.c.l.b16 %v279
        %v978 = vunpack.c.h.b16 %v279
        %v979 = vunpack.c.l.b16 %v280
        %v980 = vunpack.c.h.b16 %v280
        %v981 = vunpack.c.l.b16 %v281
        %v982 = vunpack.c.h.b16 %v281
        %v983 = vunpack.c.l.b16 %v282
        %v984 = vunpack.c.h.b16 %v282
        %v985 = vunpack.c.l.b16 %v283
        %v986 = vunpack.c.h.b16 %v283
        %v987 = vunpack.c.l.b16 %v284
        %v988 = vunpack.c.h.b16 %v284
        %v989 = vunpack.c.l.b16 %v285
        %v990 = vunpack.c.h.b16 %v285
        %v991 = vunpack.c.l.b16 %v286
        %v992 = vunpack.c.h.b16 %v286
        %v993 = vunpack.c.l.b16 %v287
        %v994 = vunpack.c.h.b16 %v287
        %v995 = vunpack.c.l.b16 %v288
        %v996 = vunpack.c.h.b16 %v288
        %v997 = vunpack.c.l.b16 %v289
        %v998 = vunpack.c.h.b16 %v289
        %v999 = vunpack.c.l.b16 %v290
        %v1000 = vunpack.c.h.b16 %v290
        %v1001 = vunpack.c.l.b16 %v291
        %v1002 = vunpack.c.h.b16 %v291
        %v1003 = vunpack.c.l.b16 %v292
        %v1004 = vunpack.c.h.b16 %v292
        %v1005 = vunpack.c.l.b16 %v293
        %v1006 = vunpack.c.h.b16 %v293
        %v1007 = vunpack.c.l.b16 %v294
        %v1008 = vunpack.c.h.b16 %v294
        %v1009 = vunpack.c.l.b16 %v295
        %v1010 = vunpack.c.h.b16 %v295
        %v1011 = vunpack.c.l.b16 %v296
        %v1012 = vunpack.c.h.b16 %v296
        %v1013 = vunpack.c.l.b16 %v297
        %v1014 = vunpack.c.h.b16 %v297
        %v1015 = vunpack.c.l.b16 %v298
        %v1016 = vunpack.c.h.b16 %v298
        %v1017 = vunpack.c.l.b16 %v299
        %v1018 = vunpack.c.h.b16 %v299
        %v1019 = vunpack.c.l.b16 %v300
        %v1020 = vunpack.c.h.b16 %v300
        %v1021 = vunpack.c.l.b16 %v301
        %v1022 = vunpack.c.h.b16 %v301
        %v1023 = vunpack.c.l.b16 %v302
        %v1024 = vunpack.c.h.b16 %v302
        %v1025 = vunpack.c.l.b16 %v303
        %v1026 = vunpack.c.h.b16 %v303
        %v1027 = vunpack.c.l.b16 %v304
        %v1028 = vunpack.c.h.b16 %v304
        %v1029 = vunpack.c.l.b16 %v305
        %v1030 = vunpack.c.h.b16 %v305
        %v1031 = vunpack.c.l.b16 %v306
        %v1032 = vunpack.c.h.b16 %v306
        %v1033 = vunpack.c.l.b16 %v307
        %v1034 = vunpack.c.h.b16 %v307
        %v1035 = vunpack.c.l.b16 %v308
        %v1036 = vunpack.c.h.b16 %v308
        %v1037 = vunpack.c.l.b16 %v309
        %v1038 = vunpack.c.h.b16 %v309
        %v1039 = vunpack.c.l.b16 %v310
        %v1040 = vunpack.c.h.b16 %v310
        %v1041 = vunpack.c.l.b16 %v311
        %v1042 = vunpack.c.h.b16 %v311
        %v1043 = vunpack.c.l.b16 %v312
        %v1044 = vunpack.c.h.b16 %v312
        %v1045 = vunpack.c.l.b16 %v313
        %v1046 = vunpack.c.h.b16 %v313
        %v1047 = vunpack.c.l.b16 %v314
        %v1048 = vunpack.c.h.b16 %v314
        %v1049 = vunpack.c.l.b16 %v315
        %v1050 = vunpack.c.h.b16 %v315
        %v1051 = vunpack.c.l.b16 %v316
        %v1052 = vunpack.c.h.b16 %v316
        %v1053 = vunpack.c.l.b16 %v317
        %v1054 = vunpack.c.h.b16 %v317
        %v1055 = vunpack.c.l.b16 %v318
        %v1056 = vunpack.c.h.b16 %v318
        %v1057 = vunpack.c.l.b16 %v319
        %v1058 = vunpack.c.h.b16 %v319
        %v1059 = vunpack.c.l.b16 %v320
        %v1060 = vunpack.c.h.b16 %v320
        %v1061 = vunpack.c.l.b16 %v321
        %v1062 = vunpack.c.h.b16 %v321
        %v1063 = vunpack.c.l.b16 %v322
        %v1064 = vunpack.c.h.b16 %v322
        %v1065 = vunpack.c.l.b16 %v323
        %v1066 = vunpack.c.h.b16 %v323
        %v1067 = vunpack.c.l.b16 %v324
        %v1068 = vunpack.c.h.b16 %v324
        %v1069 = vunpack.c.l.b16 %v325
        %v1070 = vunpack.c.h.b16 %v325
        %v1071 = vunpack.c.l.b16 %v326
        %v1072 = vunpack.c.h.b16 %v326
        %v1073 = vunpack.c.l.b16 %v327
        %v1074 = vunpack.c.h.b16 %v327
        %v1075 = vunpack.c.l.b16 %v328
        %v1076 = vunpack.c.h.b16 %v328
        %v1077 = vunpack.c.l.b16 %v329
        %v1078 = vunpack.c.h.b16 %v329
        %v1079 = vunpack.c.l.b16 %v330
        %v1080 = vunpack.c.h.b16 %v330
        %v1081 = vunpack.c.l.b16 %v331
        %v1082 = vunpack.c.h.b16 %v331
        %v1083 = vunpack.c.l.b16 %v332
        %v1084 = vunpack.c.h.b16 %v332
        %v1085 = vunpack.c.l.b16 %v333
        %v1086 = vunpack.c.h.b16 %v333
        %v1087 = vunpack.c.l.b16 %v334
        %v1088 = vunpack.c.h.b16 %v334
        %v1089 = vunpack.c.l.b16 %v335
        %v1090 = vunpack.c.h.b16 %v335
        %v1091 = vunpack.c.l.b16 %v336
        %v1092 = vunpack.c.h.b16 %v336
        %v1093 = vunpack.c.l.b16 %v337
        %v1094 = vunpack.c.h.b16 %v337
        %v1095 = vunpack.c.l.b16 %v338
        %v1096 = vunpack.c.h.b16 %v338
        %v1097 = vunpack.c.l.b16 %v339
        %v1098 = vunpack.c.h.b16 %v339
        %v1099 = vunpack.c.l.b16 %v340
        %v1100 = vunpack.c.h.b16 %v340
        %v1101 = vunpack.c.l.b16 %v341
        %v1102 = vunpack.c.h.b16 %v341
        %v1103 = vunpack.c.l.b16 %v342
        %v1104 = vunpack.c.h.b16 %v342
        %v1105 = vunpack.c.l.b16 %v343
        %v1106 = vunpack.c.h.b16 %v343
        %v1107 = vunpack.c.l.b16 %v344
        %v1108 = vunpack.c.h.b16 %v344
        %v1109 = vunpack.c.l.b16 %v345
        %v1110 = vunpack.c.h.b16 %v345
        %v1111 = vunpack.c.l.b16 %v346
        %v1112 = vunpack.c.h.b16 %v346
        %v1113 = vunpack.c.l.b16 %v347
        %v1114 = vunpack.c.h.b16 %v347
        %v1115 = vunpack.c.l.b16 %v348
        %v1116 = vunpack.c.h.b16 %v348
        %v1117 = vunpack.c.l.b16 %v349
        %v1118 = vunpack.c.h.b16 %v349
        %v1119 = vunpack.c.l.b16 %v350
        %v1120 = vunpack.c.h.b16 %v350
        %v1121 = vunpack.c.l.b16 %v351
        %v1122 = vunpack.c.h.b16 %v351
        %v1123 = vunpack.c.l.b16 %v352
        %v1124 = vunpack.c.h.b16 %v352
        %v1125 = vunpack.c.l.b16 %v353
        %v1126 = vunpack.c.h.b16 %v353
        %v1127 = vunpack.c.l.b16 %v354
        %v1128 = vunpack.c.h.b16 %v354
        %v1129 = vunpack.c.l.b16 %v355
        %v1130 = vunpack.c.h.b16 %v355
        %v1131 = vunpack.c.l.b16 %v356
        %v1132 = vunpack.c.h.b16 %v356
        %v1133 = vunpack.c.l.b16 %v357
        %v1134 = vunpack.c.h.b16 %v357
        %v1135 = vunpack.c.l.b16 %v358
        %v1136 = vunpack.c.h.b16 %v358
        %v1137 = vunpack.c.l.b16 %v359
        %v1138 = vunpack.c.h.b16 %v359
        %v1139 = vunpack.c.l.b16 %v360
        %v1140 = vunpack.c.h.b16 %v360
        %v1141 = vunpack.c.l.b16 %v361
        %v1142 = vunpack.c.h.b16 %v361
        %v1143 = vunpack.c.l.b16 %v362
        %v1144 = vunpack.c.h.b16 %v362
        %v1145 = vunpack.c.l.b16 %v363
        %v1146 = vunpack.c.h.b16 %v363
        %v1147 = vunpack.c.l.b16 %v364
        %v1148 = vunpack.c.h.b16 %v364
        %v1149 = vunpack.c.l.b16 %v365
        %v1150 = vunpack.c.h.b16 %v365
        %v1151 = vunpack.c.l.b16 %v366
        %v1152 = vunpack.c.h.b16 %v366
        %v1153 = vunpack.c.l.b16 %v367
        %v1154 = vunpack.c.h.b16 %v367
        %v1155 = vunpack.c.l.b16 %v368
        %v1156 = vunpack.c.h.b16 %v368
        %v1157 = vunpack.c.l.b16 %v369
        %v1158 = vunpack.c.h.b16 %v369
        %v1159 = vunpack.c.l.b16 %v370
        %v1160 = vunpack.c.h.b16 %v370
        %v1161 = vunpack.c.l.b16 %v371
        %v1162 = vunpack.c.h.b16 %v371
        %v1163 = vunpack.c.l.b16 %v372
        %v1164 = vunpack.c.h.b16 %v372
        %v1165 = vunpack.c.l.b16 %v373
        %v1166 = vunpack.c.h.b16 %v373
        %v1167 = vunpack.c.l.b16 %v374
        %v1168 = vunpack.c.h.b16 %v374
        %v1169 = vunpack.c.l.b16 %v375
        %v1170 = vunpack.c.h.b16 %v375
        %v1171 = vunpack.c.l.b16 %v376
        %v1172 = vunpack.c.h.b16 %v376
        %v1173 = vunpack.c.l.b16 %v377
        %v1174 = vunpack.c.h.b16 %v377
        %v1175 = vunpack.c.l.b16 %v378
        %v1176 = vunpack.c.h.b16 %v378
        %v1177 = vunpack.c.l.b16 %v379
        %v1178 = vunpack.c.h.b16 %v379
        %v1179 = vunpack.c.l.b16 %v380
        %v1180 = vunpack.c.h.b16 %v380
        %v1181 = vunpack.c.l.b16 %v381
        %v1182 = vunpack.c.h.b16 %v381
        %v1183 = vunpack.c.l.b16 %v382
        %v1184 = vunpack.c.h.b16 %v382
        %v1185 = vunpack.c.l.b16 %v383
        %v1186 = vunpack.c.h.b16 %v383
        %v1187 = vunpack.c.l.b16 %v384
        %v1188 = vunpack.c.h.b16 %v384
        %v1189 = vunpack.c.l.b16 %v385
        %v1190 = vunpack.c.h.b16 %v385
        %v1191 = vunpack.c.l.b16 %v386
        %v1192 = vunpack.c.h.b16 %v386
        %v1193 = vunpack.c.l.b16 %v387
        %v1194 = vunpack.c.h.b16 %v387
        %v1195 = vunpack.c.l.b16 %v388
        %v1196 = vunpack.c.h.b16 %v388
        %v1197 = vunpack.c.l.b16 %v389
        %v1198 = vunpack.c.h.b16 %v389
        %v1199 = vunpack.c.l.b16 %v390
        %v1200 = vunpack.c.h.b16 %v390
        %v1201 = vunpack.c.l.b16 %v391
        %v1202 = vunpack.c.h.b16 %v391
        %v1203 = vunpack.c.l.b16 %v392
        %v1204 = vunpack.c.h.b16 %v392
        %v1205 = vunpack.c.l.b16 %v393
        %v1206 = vunpack.c.h.b16 %v393
        %v1207 = vunpack.c.l.b16 %v394
        %v1208 = vunpack.c.h.b16 %v394
        %v1209 = vunpack.c.l.b16 %v395
        %v1210 = vunpack.c.h.b16 %v395
        %v1211 = vunpack.c.l.b16 %v396
        %v1212 = vunpack.c.h.b16 %v396
        %v1213 = vunpack.c.l.b16 %v397
        %v1214 = vunpack.c.h.b16 %v397
        %v1215 = vunpack.c.l.b16 %v398
        %v1216 = vunpack.c.h.b16 %v398
        %v1217 = vunpack.c.l.b16 %v399
        %v1218 = vunpack.c.h.b16 %v399
        %v1219 = vunpack.c.l.b16 %v400
        %v1220 = vunpack.c.h.b16 %v400
        %v1221 = vunpack.c.l.b16 %v401
        %v1222 = vunpack.c.h.b16 %v401
        %v1223 = vunpack.c.l.b16 %v402
        %v1224 = vunpack.c.h.b16 %v402
        %v1225 = vunpack.c.l.b16 %v403
        %v1226 = vunpack.c.h.b16 %v403
        %v1227 = vunpack.c.l.b16 %v404
        %v1228 = vunpack.c.h.b16 %v404
        %v1229 = vunpack.c.l.b16 %v405
        %v1230 = vunpack.c.h.b16 %v405
        %v1231 = vunpack.c.l.b16 %v406
        %v1232 = vunpack.c.h.b16 %v406
        %v1233 = vunpack.c.l.b16 %v407
        %v1234 = vunpack.c.h.b16 %v407
        %v1235 = vunpack.c.l.b16 %v408
        %v1236 = vunpack.c.h.b16 %v408
        %v1237 = vunpack.c.l.b16 %v409
        %v1238 = vunpack.c.h.b16 %v409
        %v1239 = vunpack.c.l.b16 %v410
        %v1240 = vunpack.c.h.b16 %v410
        %v1241 = vunpack.c.l.b16 %v411
        %v1242 = vunpack.c.h.b16 %v411
        %v1243 = vunpack.c.l.b16 %v412
        %v1244 = vunpack.c.h.b16 %v412
        %v1245 = vunpack.c.l.b16 %v413
        %v1246 = vunpack.c.h.b16 %v413
        %v1247 = vunpack.c.l.b16 %v414
        %v1248 = vunpack.c.h.b16 %v414
        %v1249 = vunpack.c.l.b16 %v415
        %v1250 = vunpack.c.h.b16 %v415
        %v1251 = vunpack.c.l.b16 %v416
        %v1252 = vunpack.c.h.b16 %v416
        %v1253 = vunpack.c.l.b16 %v417
        %v1254 = vunpack.c.h.b16 %v417
        %v1255 = vunpack.c.l.b16 %v418
        %v1256 = vunpack.c.h.b16 %v418
        %v1257 = vunpack.c.l.b16 %v419
        %v1258 = vunpack.c.h.b16 %v419
        %v1259 = vunpack.c.l.b16 %v420
        %v1260 = vunpack.c.h.b16 %v420
        %v1261 = vunpack.c.l.b16 %v421
        %v1262 = vunpack.c.h.b16 %v421
        %v1263 = vunpack.c.l.b16 %v422
        %v1264 = vunpack.c.h.b16 %v422
        %v1265 = vunpack.c.l.b16 %v423
        %v1266 = vunpack.c.h.b16 %v423
        %v1267 = vunpack.c.l.b16 %v424
        %v1268 = vunpack.c.h.b16 %v424
        %v1269 = vunpack.c.l.b16 %v425
        %v1270 = vunpack.c.h.b16 %v425
        %v1271 = vunpack.c.l.b16 %v426
        %v1272 = vunpack.c.h.b16 %v426
        %v1273 = vunpack.c.l.b16 %v427
        %v1274 = vunpack.c.h.b16 %v427
        %v1275 = vunpack.c.l.b16 %v428
        %v1276 = vunpack.c.h.b16 %v428
        %v1277 = vunpack.c.l.b16 %v429
        %v1278 = vunpack.c.h.b16 %v429
        %v1279 = vunpack.c.l.b16 %v430
        %v1280 = vunpack.c.h.b16 %v430
        %v1281 = vunpack.c.l.b16 %v431
        %v1282 = vunpack.c.h.b16 %v431
        %v1283 = vunpack.c.l.b16 %v432
        %v1284 = vunpack.c.h.b16 %v432
        %v1285 = vunpack.c.l.b16 %v433
        %v1286 = vunpack.c.h.b16 %v433
        %v1287 = vunpack.c.l.b16 %v434
        %v1288 = vunpack.c.h.b16 %v434
        %v1289 = vunpack.c.l.b16 %v435
        %v1290 = vunpack.c.h.b16 %v435
        %v1291 = vunpack.c.l.b16 %v436
        %v1292 = vunpack.c.h.b16 %v436
        %v1293 = vunpack.c.l.b16 %v437
        %v1294 = vunpack.c.h.b16 %v437
        %v1295 = vunpack.c.l.b16 %v438
        %v1296 = vunpack.c.h.b16 %v438
        %v1297 = vunpack.c.l.b16 %v439
        %v1298 = vunpack.c.h.b16 %v439
        %v1299 = vunpack.c.l.b16 %v440
        %v1300 = vunpack.c.h.b16 %v440
        %v1301 = vunpack.c.l.b16 %v441
        %v1302 = vunpack.c.h.b16 %v441
        %v1303 = vunpack.c.l.b16 %v442
        %v1304 = vunpack.c.h.b16 %v442
        %v1305 = vunpack.c.l.b16 %v443
        %v1306 = vunpack.c.h.b16 %v443
        %v1307 = vunpack.c.l.b16 %v444
        %v1308 = vunpack.c.h.b16 %v444
        %v1309 = vunpack.c.l.b16 %v445
        %v1310 = vunpack.c.h.b16 %v445
        %v1311 = vunpack.c.l.b16 %v446
        %v1312 = vunpack.c.h.b16 %v446
        %v1313 = vunpack.c.l.b16 %v447
        %v1314 = vunpack.c.h.b16 %v447
        %v1315 = vunpack.c.l.b16 %v448
        %v1316 = vunpack.c.h.b16 %v448
        %v1317 = vunpack.c.l.b16 %v449
        %v1318 = vunpack.c.h.b16 %v449
        %v1319 = vunpack.c.l.b16 %v450
        %v1320 = vunpack.c.h.b16 %v450
        %v1321 = vunpack.c.l.b16 %v451
        %v1322 = vunpack.c.h.b16 %v451
        %v1323 = vunpack.c.l.b16 %v452
        %v1324 = vunpack.c.h.b16 %v452
        %v1325 = vunpack.c.l.b16 %v453
        %v1326 = vunpack.c.h.b16 %v453
        %v1327 = vunpack.c.l.b16 %v454
        %v1328 = vunpack.c.h.b16 %v454
        %v1329 = vunpack.c.l.b16 %v455
        %v1330 = vunpack.c.h.b16 %v455
        %v1331 = vunpack.c.l.b16 %v456
        %v1332 = vunpack.c.h.b16 %v456
        %v1333 = vunpack.c.l.b16 %v457
        %v1334 = vunpack.c.h.b16 %v457
        %v1335 = vunpack.c.l.b16 %v458
        %v1336 = vunpack.c.h.b16 %v458
        %v1337 = vunpack.c.l.b16 %v459
        %v1338 = vunpack.c.h.b16 %v459
        %v1339 = vunpack.c.l.b16 %v460
        %v1340 = vunpack.c.h.b16 %v460
        %v1341 = vunpack.c.l.b16 %v461
        %v1342 = vunpack.c.h.b16 %v461
        %v1343 = vunpack.c.l.b16 %v462
        %v1344 = vunpack.c.h.b16 %v462
        %v1345 = vunpack.c.l.b16 %v463
        %v1346 = vunpack.c.h.b16 %v463
        %v1347 = vunpack.c.l.b16 %v464
        %v1348 = vunpack.c.h.b16 %v464
        %v1349 = vunpack.c.l.b16 %v465
        %v1350 = vunpack.c.h.b16 %v465
        %v1351 = vunpack.c.l.b16 %v466
        %v1352 = vunpack.c.h.b16 %v466
        %v1353 = vunpack.c.l.b16 %v467
        %v1354 = vunpack.c.h.b16 %v467
        %v1355 = vunpack.c.l.b16 %v468
        %v1356 = vunpack.c.h.b16 %v468
        %v1357 = vunpack.c.l.b16 %v469
        %v1358 = vunpack.c.h.b16 %v469
        %v1359 = vunpack.c.l.b16 %v470
        %v1360 = vunpack.c.h.b16 %v470
        %v1361 = vunpack.c.l.b16 %v471
        %v1362 = vunpack.c.h.b16 %v471
        %v1363 = vunpack.c.l.b16 %v472
        %v1364 = vunpack.c.h.b16 %v472
        %v1365 = vunpack.c.l.b16 %v473
        %v1366 = vunpack.c.h.b16 %v473
        %v1367 = vunpack.c.l.b16 %v474
        %v1368 = vunpack.c.h.b16 %v474
        %v1369 = vunpack.c.l.b16 %v475
        %v1370 = vunpack.c.h.b16 %v475
        %v1371 = vunpack.c.l.b16 %v476
        %v1372 = vunpack.c.h.b16 %v476
        %v1373 = vunpack.c.l.b16 %v477
        %v1374 = vunpack.c.h.b16 %v477
        %v1375 = vunpack.c.l.b16 %v478
        %v1376 = vunpack.c.h.b16 %v478
        %v1377 = vunpack.c.l.b16 %v479
        %v1378 = vunpack.c.h.b16 %v479
        %v1379 = vunpack.c.l.b16 %v480
        %v1380 = vunpack.c.h.b16 %v480
        %v1381 = vunpack.c.l.b16 %v481
        %v1382 = vunpack.c.h.b16 %v481
        %v1383 = vunpack.c.l.b16 %v482
        %v1384 = vunpack.c.h.b16 %v482
        %v1385 = vunpack.c.l.b16 %v483
        %v1386 = vunpack.c.h.b16 %v483
        %v1387 = vunpack.c.l.b16 %v484
        %v1388 = vunpack.c.h.b16 %v484
        %v1389 = vunpack.c.l.b16 %v485
        %v1390 = vunpack.c.h.b16 %v485
        %v1391 = vunpack.c.l.b16 %v486
        %v1392 = vunpack.c.h.b16 %v486
        %v1393 = vunpack.c.l.b16 %v487
        %v1394 = vunpack.c.h.b16 %v487
        %v1395 = vunpack.c.l.b16 %v488
        %v1396 = vunpack.c.h.b16 %v488
        %v1397 = vunpack.c.l.b16 %v489
        %v1398 = vunpack.c.h.b16 %v489
        %v1399 = vunpack.c.l.b16 %v490
        %v1400 = vunpack.c.h.b16 %v490
        %v1401 = vunpack.c.l.b16 %v491
        %v1402 = vunpack.c.h.b16 %v491
        %v1403 = vunpack.c.l.b16 %v492
        %v1404 = vunpack.c.h.b16 %v492
        %v1405 = vpack.c.b16 %v957, %v893
        %v1406 = vpack.c.b16 %v958, %v894
        %v1407 = vpack.c.b16 %v959, %v895
        %v1408 = vpack.c.b16 %v960, %v896
        %v1409 = vpack.c.b16 %v961, %v897
        %v1410 = vpack.c.b16 %v962, %v898
        %v1411 = vpack.c.b16 %v963, %v899
        %v1412 = vpack.c.b16 %v964, %v900
        %v1413 = vpack.c.b16 %v965, %v901
        %v1414 = vpack.c.b16 %v966, %v902
        %v1415 = vpack.c.b16 %v967, %v903
        %v1416 = vpack.c.b16 %v968, %v904
        %v1417 = vpack.c.b16 %v969, %v905
        %v1418 = vpack.c.b16 %v970, %v906
        %v1419 = vpack.c.b16 %v971, %v907
        %v1420 = vpack.c.b16 %v972, %v908
        %v1421 = vpack.c.b16 %v973, %v909
        %v1422 = vpack.c.b16 %v974, %v910
        %v1423 = vpack.c.b16 %v975, %v911
        %v1424 = vpack.c.b16 %v976, %v912
        %v1425 = vpack.c.b16 %v977, %v913
        %v1426 = vpack.c.b16 %v978, %v914
        %v1427 = vpack.c.b16 %v979, %v915
        %v1428 = vpack.c.b16 %v980, %v916
        %v1429 = vpack.c.b16 %v981, %v917
        %v1430 = vpack.c.b16 %v982, %v918
        %v1431 = vpack.c.b16 %v983, %v919
        %v1432 = vpack.c.b16 %v984, %v920
        %v1433 = vpack.c.b16 %v985, %v921
        %v1434 = vpack.c.b16 %v986, %v922
        %v1435 = vpack.c.b16 %v987, %v923
        %v1436 = vpack.c.b16 %v988, %v924
        %v1437 = vpack.c.b16 %v989, %v925
        %v1438 = vpack.c.b16 %v990, %v926
        %v1439 = vpack.c.b16 %v991, %v927
        %v1440 = vpack.c.b16 %v992, %v928
        %v1441 = vpack.c.b16 %v993, %v929
        %v1442 = vpack.c.b16 %v994, %v930
        %v1443 = vpack.c.b16 %v995, %v931
        %v1444 = vpack.c.b16 %v996, %v932
        %v1445 = vpack.c.b16 %v997, %v933
        %v1446 = vpack.c.b16 %v998, %v934
        %v1447 = vpack.c.b16 %v999, %v935
        %v1448 = vpack.c.b16 %v1000, %v936
        %v1449 = vpack.c.b16 %v1001, %v937
        %v1450 = vpack.c.b16 %v1002, %v938
        %v1451 = vpack.c.b16 %v1003, %v939
        %v1452 = vpack.c.b16 %v1004, %v940
        %v1453 = vpack.c.b16 %v1005, %v941
        %v1454 = vpack.c.b16 %v1006, %v942
        %v1455 = vpack.c.b16 %v1007, %v943
        %v1456 = vpack.c.b16 %v1008, %v944
        %v1457 = vpack.c.b16 %v1009, %v945
        %v1458 = vpack.c.b16 %v1010, %v946
        %v1459 = vpack.c.b16 %v1011, %v947
        %v1460 = vpack.c.b16 %v1012, %v948
        %v1461 = vpack.c.b16 %v1013, %v949
        %v1462 = vpack.c.b16 %v1014, %v950
        %v1463 = vpack.c.b16 %v1015, %v951
        %v1464 = vpack.c.b16 %v1016, %v952
        %v1465 = vpack.c.b16 %v1017, %v953
        %v1466 = vpack.c.b16 %v1018, %v954
        %v1467 = vpack.c.b16 %v1019, %v955
        %v1468 = vpack.c.b16 %v1020, %v956
        %v1469 = vpack.c.b16 %v1085, %v1021
        %v1470 = vpack.c.b16 %v1086, %v1022
        %v1471 = vpack.c.b16 %v1087, %v1023
        %v1472 = vpack.c.b16 %v1088, %v1024
        %v1473 = vpack.c.b16 %v1089, %v1025
        %v1474 = vpack.c.b16 %v1090, %v1026
        %v1475 = vpack.c.b16 %v1091, %v1027
        %v1476 = vpack.c.b16 %v1092, %v1028
        %v1477 = vpack.c.b16 %v1093, %v1029
        %v1478 = vpack.c.b16 %v1094, %v1030
        %v1479 = vpack.c.b16 %v1095, %v1031
        %v1480 = vpack.c.b16 %v1096, %v1032
        %v1481 = vpack.c.b16 %v1097, %v1033
        %v1482 = vpack.c.b16 %v1098, %v1034
        %v1483 = vpack.c.b16 %v1099, %v1035
        %v1484 = vpack.c.b16 %v1100, %v1036
        %v1485 = vpack.c.b16 %v1101, %v1037
        %v1486 = vpack.c.b16 %v1102, %v1038
        %v1487 = vpack.c.b16 %v1103, %v1039
        %v1488 = vpack.c.b16 %v1104, %v1040
        %v1489 = vpack.c.b16 %v1105, %v1041
        %v1490 = vpack.c.b16 %v1106, %v1042
        %v1491 = vpack.c.b16 %v1107, %v1043
        %v1492 = vpack.c.b16 %v1108, %v1044
        %v1493 = vpack.c.b16 %v1109, %v1045
        %v1494 = vpack.c.b16 %v1110, %v1046
        %v1495 = vpack.c.b16 %v1111, %v1047
        %v1496 = vpack.c.b16 %v1112, %v1048
        %v1497 = vpack.c.b16 %v1113, %v1049
        %v1498 = vpack.c.b16 %v1114, %v1050
        %v1499 = vpack.c.b16 %v1115, %v1051
        %v1500 = vpack.c.b16 %v1116, %v1052
        %v1501 = vpack.c.b16 %v1117, %v1053
        %v1502 = vpack.c.b16 %v1118, %v1054
        %v1503 = vpack.c.b16 %v1119, %v1055
        %v1504 = vpack.c.b16 %v1120, %v1056
        %v1505 = vpack.c.b16 %v1121, %v1057
        %v1506 = vpack.c.b16 %v1122, %v1058
        %v1507 = vpack.c.b16 %v1123, %v1059
        %v1508 = vpack.c.b16 %v1124, %v1060
        %v1509 = vpack.c.b16 %v1125, %v1061
        %v1510 = vpack.c.b16 %v1126, %v1062
        %v1511 = vpack.c.b16 %v1127, %v1063
        %v1512 = vpack.c.b16 %v1128, %v1064
        %v1513 = vpack.c.b16 %v1129, %v1065
        %v1514 = vpack.c.b16 %v1130, %v1066
        %v1515 = vpack.c.b16 %v1131, %v1067
        %v1516 = vpack.c.b16 %v1132, %v1068
        %v1517 = vpack.c.b16 %v1133, %v1069
        %v1518 = vpack.c.b16 %v1134, %v1070
        %v1519 = vpack.c.b16 %v1135, %v1071
        %v1520 = vpack.c.b16 %v1136, %v1072
        %v1521 = vpack.c.b16 %v1137, %v1073
        %v1522 = vpack.c.b16 %v1138, %v1074
        %v1523 = vpack.c.b16 %v1139, %v1075
        %v1524 = vpack.c.b16 %v1140, %v1076
        %v1525 = vpack.c.b16 %v1141, %v1077
        %v1526 = vpack.c.b16 %v1142, %v1078
        %v1527 = vpack.c.b16 %v1143, %v1079
        %v1528 = vpack.c.b16 %v1144, %v1080
        %v1529 = vpack.c.b16 %v1145, %v1081
        %v1530 = vpack.c.b16 %v1146, %v1082
        %v1531 = vpack.c.b16 %v1147, %v1083
        %v1532 = vpack.c.b16 %v1148, %v1084
        %v1533 = vpack.c.b16 %v1213, %v1149
        %v1534 = vpack.c.b16 %v1214, %v1150
        %v1535 = vpack.c.b16 %v1215, %v1151
        %v1536 = vpack.c.b16 %v1216, %v1152
        %v1537 = vpack.c.b16 %v1217, %v1153
        %v1538 = vpack.c.b16 %v1218, %v1154
        %v1539 = vpack.c.b16 %v1219, %v1155
        %v1540 = vpack.c.b16 %v1220, %v1156
        %v1541 = vpack.c.b16 %v1221, %v1157
        %v1542 = vpack.c.b16 %v1222, %v1158
        %v1543 = vpack.c.b16 %v1223, %v1159
        %v1544 = vpack.c.b16 %v1224, %v1160
        %v1545 = vpack.c.b16 %v1225, %v1161
        %v1546 = vpack.c.b16 %v1226, %v1162
        %v1547 = vpack.c.b16 %v1227, %v1163
        %v1548 = vpack.c.b16 %v1228, %v1164
        %v1549 = vpack.c.b16 %v1229, %v1165
        %v1550 = vpack.c.b16 %v1230, %v1166
        %v1551 = vpack.c.b16 %v1231, %v1167
        %v1552 = vpack.c.b16 %v1232, %v1168
        %v1553 = vpack.c.b16 %v1233, %v1169
        %v1554 = vpack.c.b16 %v1234, %v1170
        %v1555 = vpack.c.b16 %v1235, %v1171
        %v1556 = vpack.c.b16 %v1236, %v1172
        %v1557 = vpack.c.b16 %v1237, %v1173
        %v1558 = vpack.c.b16 %v1238, %v1174
        %v1559 = vpack.c.b16 %v1239, %v1175
        %v1560 = vpack.c.b16 %v1240, %v1176
        %v1561 = vpack.c.b16 %v1241, %v1177
        %v1562 = vpack.c.b16 %v1242, %v1178
        %v1563 = vpack.c.b16 %v1243, %v1179
        %v1564 = vpack.c.b16 %v1244, %v1180
        %v1565 = vpack.c.b16 %v1245, %v1181
        %v1566 = vpack.c.b16 %v1246, %v1182
        %v1567 = vpack.c.b16 %v1247, %v1183
        %v1568 = vpack.c.b16 %v1248, %v1184
        %v1569 = vpack.c.b16 %v1249, %v1185
        %v1570 = vpack.c.b16 %v1250, %v1186
        %v1571 = vpack.c.b16 %v1251, %v1187
        %v1572 = vpack.c.b16 %v1252, %v1188
        %v1573 = vpack.c.b16 %v1253, %v1189
        %v1574 = vpack.c.b16 %v1254, %v1190
        %v1575 = vpack.c.b16 %v1255, %v1191
        %v1576 = vpack.c.b16 %v1256, %v1192
        %v1577 = vpack.c.b16 %v1257, %v1193
        %v1578 = vpack.c.b16 %v1258, %v1194
        %v1579 = vpack.c.b16 %v1259, %v1195
        %v1580 = vpack.c.b16 %v1260, %v1196
        %v1581 = vpack.c.b16 %v1261, %v1197
        %v1582 = vpack.c.b16 %v1262, %v1198
        %v1583 = vpack.c.b16 %v1263, %v1199
        %v1584 = vpack.c.b16 %v1264, %v1200
        %v1585 = vpack.c.b16 %v1265, %v1201
        %v1586 = vpack.c.b16 %v1266, %v1202
        %v1587 = vpack.c.b16 %v1267, %v1203
        %v1588 = vpack.c.b16 %v1268, %v1204
        %v1589 = vpack.c.b16 %v1269, %v1205
        %v1590 = vpack.c.b16 %v1270, %v1206
        %v1591 = vpack.c.b16 %v1271, %v1207
        %v1592 = vpack.c.b16 %v1272, %v1208
        %v1593 = vpack.c.b16 %v1273, %v1209
        %v1594 = vpack.c.b16 %v1274, %v1210
        %v1595 = vpack.c.b16 %v1275, %v1211
        %v1596 = vpack.c.b16 %v1276, %v1212
        %v1597 = vpack.c.b16 %v1341, %v1277
        %v1598 = vpack.c.b16 %v1342, %v1278
        %v1599 = vpack.c.b16 %v1343, %v1279
        %v1600 = vpack.c.b16 %v1344, %v1280
        %v1601 = vpack.c.b16 %v1345, %v1281
        %v1602 = vpack.c.b16 %v1346, %v1282
        %v1603 = vpack.c.b16 %v1347, %v1283
        %v1604 = vpack.c.b16 %v1348, %v1284
        %v1605 = vpack.c.b16 %v1349, %v1285
        %v1606 = vpack.c.b16 %v1350, %v1286
        %v1607 = vpack.c.b16 %v1351, %v1287
        %v1608 = vpack.c.b16 %v1352, %v1288
        %v1609 = vpack.c.b16 %v1353, %v1289
        %v1610 = vpack.c.b16 %v1354, %v1290
        %v1611 = vpack.c.b16 %v1355, %v1291
        %v1612 = vpack.c.b16 %v1356, %v1292
        %v1613 = vpack.c.b16 %v1357, %v1293
        %v1614 = vpack.c.b16 %v1358, %v1294
        %v1615 = vpack.c.b16 %v1359, %v1295
        %v1616 = vpack.c.b16 %v1360, %v1296
        %v1617 = vpack.c.b16 %v1361, %v1297
        %v1618 = vpack.c.b16 %v1362, %v1298
        %v1619 = vpack.c.b16 %v1363, %v1299
        %v1620 = vpack.c.b16 %v1364, %v1300
        %v1621 = vpack.c.b16 %v1365, %v1301
        %v1622 = vpack.c.b16 %v1366, %v1302
        %v1623 = vpack.c.b16 %v1367, %v1303
        %v1624 = vpack.c.b16 %v1368, %v1304
        %v1625 = vpack.c.b16 %v1369, %v1305
        %v1626 = vpack.c.b16 %v1370, %v1306
        %v1627 = vpack.c.b16 %v1371, %v1307
        %v1628 = vpack.c.b16 %v1372, %v1308
        %v1629 = vpack.c.b16 %v1373, %v1309
        %v1630 = vpack.c.b16 %v1374, %v1310
        %v1631 = vpack.c.b16 %v1375, %v1311
        %v1632 = vpack.c.b16 %v1376, %v1312
        %v1633 = vpack.c.b16 %v1377, %v1313
        %v1634 = vpack.c.b16 %v1378, %v1314
        %v1635 = vpack.c.b16 %v1379, %v1315
        %v1636 = vpack.c.b16 %v1380, %v1316
        %v1637 = vpack.c.b16 %v1381, %v1317
        %v1638 = vpack.c.b16 %v1382, %v1318
        %v1639 = vpack.c.b16 %v1383, %v1319
        %v1640 = vpack.c.b16 %v1384, %v1320
        %v1641 = vpack.c.b16 %v1385, %v1321
        %v1642 = vpack.c.b16 %v1386, %v1322
        %v1643 = vpack.c.b16 %v1387, %v1323
        %v1644 = vpack.c.b16 %v1388, %v1324
        %v1645 = vpack.c.b16 %v1389, %v1325
        %v1646 = vpack.c.b16 %v1390, %v1326
        %v1647 = vpack.c.b16 %v1391, %v1327
        %v1648 = vpack.c.b16 %v1392, %v1328
        %v1649 = vpack.c.b16 %v1393, %v1329
        %v1650 = vpack.c.b16 %v1394, %v1330
        %v1651 = vpack.c.b16 %v1395, %v1331
        %v1652 = vpack.c.b16 %v1396, %v1332
        %v1653 = vpack.c.b16 %v1397, %v1333
        %v1654 = vpack.c.b16 %v1398, %v1334
        %v1655 = vpack.c.b16 %v1399, %v1335
        %v1656 = vpack.c.b16 %v1400, %v1336
        %v1657 = vpack.c.b16 %v1401, %v1337
        %v1658 = vpack.c.b16 %v1402, %v1338
        %v1659 = vpack.c.b16 %v1403, %v1339
        %v1660 = vpack.c.b16 %v1404, %v1340
        %vm1917 = vcmask 523264
        %v1919 = vsel %vm1917, %v236, 0
        %1921 = vmatpush.bf16.msra.mxu0 0
        %1922 = vmatpush.bf16.msra.mxu0 0
        %1923 = vmatpush.bf16.msra.mxu0 0
        %1924 = vmatpush.bf16.msra.mxu0 0
        %1925 = vmatpush.bf16.msra.mxu0 %v1597
        %1926 = vmatpush.bf16.msra.mxu0 %v1533
        %1927 = vmatpush.bf16.msra.mxu0 %v1469
        %1928 = vmatpush.bf16.msra.mxu0 %v1405
        %1929 = vmatmul.bf16.gmra.mxu0 %v1919
        %v1930 = vpop.f32.mrf.mxu0
        %v1931 = vadd.f32 %v509, %v1930
        %v1932 = vpop.f32.mrf.mxu0
        %1933 = vdwg.mxu0
        %1934 = vmatpush.bf16.msra.mxu0 0
        %1935 = vmatpush.bf16.msra.mxu0 0
        %1936 = vmatpush.bf16.msra.mxu0 0
        %1937 = vmatpush.bf16.msra.mxu0 0
        %1938 = vmatpush.bf16.msra.mxu0 %v1598
        %1939 = vmatpush.bf16.msra.mxu0 %v1534
        %1940 = vmatpush.bf16.msra.mxu0 %v1470
        %1941 = vmatpush.bf16.msra.mxu0 %v1406
        %1942 = vmatmul.bf16.gmra.mxu0 %v1919
        %v1943 = vpop.f32.mrf.mxu0
        %v1944 = vadd.f32 %v510, %v1943
        %v1945 = vpop.f32.mrf.mxu0
        %1946 = vdwg.mxu0
        %1947 = vmatpush.bf16.msra.mxu0 0
        %1948 = vmatpush.bf16.msra.mxu0 0
        %1949 = vmatpush.bf16.msra.mxu0 0
        %1950 = vmatpush.bf16.msra.mxu0 0
        %1951 = vmatpush.bf16.msra.mxu0 %v1599
        %1952 = vmatpush.bf16.msra.mxu0 %v1535
        %1953 = vmatpush.bf16.msra.mxu0 %v1471
        %1954 = vmatpush.bf16.msra.mxu0 %v1407
        %1955 = vmatmul.bf16.gmra.mxu0 %v1919
        %v1956 = vpop.f32.mrf.mxu0
        %v1957 = vadd.f32 %v511, %v1956
        %v1958 = vpop.f32.mrf.mxu0
        %1959 = vdwg.mxu0
        %1960 = vmatpush.bf16.msra.mxu0 0
        %1961 = vmatpush.bf16.msra.mxu0 0
        %1962 = vmatpush.bf16.msra.mxu0 0
        %1963 = vmatpush.bf16.msra.mxu0 0
        %1964 = vmatpush.bf16.msra.mxu0 %v1600
        %1965 = vmatpush.bf16.msra.mxu0 %v1536
        %1966 = vmatpush.bf16.msra.mxu0 %v1472
        %1967 = vmatpush.bf16.msra.mxu0 %v1408
        %1968 = vmatmul.bf16.gmra.mxu0 %v1919
        %v1969 = vpop.f32.mrf.mxu0
        %v1970 = vadd.f32 %v512, %v1969
        %v1971 = vpop.f32.mrf.mxu0
        %1972 = vdwg.mxu0
        %1973 = vmatpush.bf16.msra.mxu0 0
        %1974 = vmatpush.bf16.msra.mxu0 0
        %1975 = vmatpush.bf16.msra.mxu0 0
        %1976 = vmatpush.bf16.msra.mxu0 0
        %1977 = vmatpush.bf16.msra.mxu0 %v1601
        %1978 = vmatpush.bf16.msra.mxu0 %v1537
        %1979 = vmatpush.bf16.msra.mxu0 %v1473
        %1980 = vmatpush.bf16.msra.mxu0 %v1409
        %1981 = vmatmul.bf16.gmra.mxu0 %v1919
        %v1982 = vpop.f32.mrf.mxu0
        %v1983 = vadd.f32 %v513, %v1982
        %v1984 = vpop.f32.mrf.mxu0
        %1985 = vdwg.mxu0
        %1986 = vmatpush.bf16.msra.mxu0 0
        %1987 = vmatpush.bf16.msra.mxu0 0
        %1988 = vmatpush.bf16.msra.mxu0 0
        %1989 = vmatpush.bf16.msra.mxu0 0
        %1990 = vmatpush.bf16.msra.mxu0 %v1602
        %1991 = vmatpush.bf16.msra.mxu0 %v1538
        %1992 = vmatpush.bf16.msra.mxu0 %v1474
        %1993 = vmatpush.bf16.msra.mxu0 %v1410
        %1994 = vmatmul.bf16.gmra.mxu0 %v1919
        %v1995 = vpop.f32.mrf.mxu0
        %v1996 = vadd.f32 %v514, %v1995
        %v1997 = vpop.f32.mrf.mxu0
        %1998 = vdwg.mxu0
        %1999 = vmatpush.bf16.msra.mxu0 0
        %2000 = vmatpush.bf16.msra.mxu0 0
        %2001 = vmatpush.bf16.msra.mxu0 0
        %2002 = vmatpush.bf16.msra.mxu0 0
        %2003 = vmatpush.bf16.msra.mxu0 %v1603
        %2004 = vmatpush.bf16.msra.mxu0 %v1539
        %2005 = vmatpush.bf16.msra.mxu0 %v1475
        %2006 = vmatpush.bf16.msra.mxu0 %v1411
        %2007 = vmatmul.bf16.gmra.mxu0 %v1919
        %v2008 = vpop.f32.mrf.mxu0
        %v2009 = vadd.f32 %v515, %v2008
        %v2010 = vpop.f32.mrf.mxu0
        %2011 = vdwg.mxu0
        %2012 = vmatpush.bf16.msra.mxu0 0
        %2013 = vmatpush.bf16.msra.mxu0 0
        %2014 = vmatpush.bf16.msra.mxu0 0
        %2015 = vmatpush.bf16.msra.mxu0 0
        %2016 = vmatpush.bf16.msra.mxu0 %v1604
        %2017 = vmatpush.bf16.msra.mxu0 %v1540
        %2018 = vmatpush.bf16.msra.mxu0 %v1476
        %2019 = vmatpush.bf16.msra.mxu0 %v1412
        %2020 = vmatmul.bf16.gmra.mxu0 %v1919
        %v2021 = vpop.f32.mrf.mxu0
        %v2022 = vadd.f32 %v516, %v2021
        %v2023 = vpop.f32.mrf.mxu0
        %2024 = vdwg.mxu0
        %2025 = vmatpush.bf16.msra.mxu0 0
        %2026 = vmatpush.bf16.msra.mxu0 0
        %2027 = vmatpush.bf16.msra.mxu0 0
        %2028 = vmatpush.bf16.msra.mxu0 0
        %2029 = vmatpush.bf16.msra.mxu0 %v1605
        %2030 = vmatpush.bf16.msra.mxu0 %v1541
        %2031 = vmatpush.bf16.msra.mxu0 %v1477
        %2032 = vmatpush.bf16.msra.mxu0 %v1413
        %2033 = vmatmul.bf16.gmra.mxu0 %v1919
        %v2034 = vpop.f32.mrf.mxu0
        %v2035 = vadd.f32 %v517, %v2034
        %v2036 = vpop.f32.mrf.mxu0
        %2037 = vdwg.mxu0
        %2038 = vmatpush.bf16.msra.mxu0 0
        %2039 = vmatpush.bf16.msra.mxu0 0
        %2040 = vmatpush.bf16.msra.mxu0 0
        %2041 = vmatpush.bf16.msra.mxu0 0
        %2042 = vmatpush.bf16.msra.mxu0 %v1606
        %2043 = vmatpush.bf16.msra.mxu0 %v1542
        %2044 = vmatpush.bf16.msra.mxu0 %v1478
        %2045 = vmatpush.bf16.msra.mxu0 %v1414
        %2046 = vmatmul.bf16.gmra.mxu0 %v1919
        %v2047 = vpop.f32.mrf.mxu0
        %v2048 = vadd.f32 %v518, %v2047
        %v2049 = vpop.f32.mrf.mxu0
        %2050 = vdwg.mxu0
        %2051 = vmatpush.bf16.msra.mxu0 0
        %2052 = vmatpush.bf16.msra.mxu0 0
        %2053 = vmatpush.bf16.msra.mxu0 0
        %2054 = vmatpush.bf16.msra.mxu0 0
        %2055 = vmatpush.bf16.msra.mxu0 %v1607
        %2056 = vmatpush.bf16.msra.mxu0 %v1543
        %2057 = vmatpush.bf16.msra.mxu0 %v1479
        %2058 = vmatpush.bf16.msra.mxu0 %v1415
        %2059 = vmatmul.bf16.gmra.mxu0 %v1919
        %v2060 = vpop.f32.mrf.mxu0
        %v2061 = vadd.f32 %v519, %v2060
        %v2062 = vpop.f32.mrf.mxu0
        %2063 = vdwg.mxu0
        %2064 = vmatpush.bf16.msra.mxu0 0
        %2065 = vmatpush.bf16.msra.mxu0 0
        %2066 = vmatpush.bf16.msra.mxu0 0
        %2067 = vmatpush.bf16.msra.mxu0 0
        %2068 = vmatpush.bf16.msra.mxu0 %v1608
        %2069 = vmatpush.bf16.msra.mxu0 %v1544
        %2070 = vmatpush.bf16.msra.mxu0 %v1480
        %2071 = vmatpush.bf16.msra.mxu0 %v1416
        %2072 = vmatmul.bf16.gmra.mxu0 %v1919
        %v2073 = vpop.f32.mrf.mxu0
        %v2074 = vadd.f32 %v520, %v2073
        %v2075 = vpop.f32.mrf.mxu0
        %2076 = vdwg.mxu0
        %2077 = vmatpush.bf16.msra.mxu0 0
        %2078 = vmatpush.bf16.msra.mxu0 0
        %2079 = vmatpush.bf16.msra.mxu0 0
        %2080 = vmatpush.bf16.msra.mxu0 0
        %2081 = vmatpush.bf16.msra.mxu0 %v1609
        %2082 = vmatpush.bf16.msra.mxu0 %v1545
        %2083 = vmatpush.bf16.msra.mxu0 %v1481
        %2084 = vmatpush.bf16.msra.mxu0 %v1417
        %2085 = vmatmul.bf16.gmra.mxu0 %v1919
        %v2086 = vpop.f32.mrf.mxu0
        %v2087 = vadd.f32 %v521, %v2086
        %v2088 = vpop.f32.mrf.mxu0
        %2089 = vdwg.mxu0
        %2090 = vmatpush.bf16.msra.mxu0 0
        %2091 = vmatpush.bf16.msra.mxu0 0
        %2092 = vmatpush.bf16.msra.mxu0 0
        %2093 = vmatpush.bf16.msra.mxu0 0
        %2094 = vmatpush.bf16.msra.mxu0 %v1610
        %2095 = vmatpush.bf16.msra.mxu0 %v1546
        %2096 = vmatpush.bf16.msra.mxu0 %v1482
        %2097 = vmatpush.bf16.msra.mxu0 %v1418
        %2098 = vmatmul.bf16.gmra.mxu0 %v1919
        %v2099 = vpop.f32.mrf.mxu0
        %v2100 = vadd.f32 %v522, %v2099
        %v2101 = vpop.f32.mrf.mxu0
        %2102 = vdwg.mxu0
        %2103 = vmatpush.bf16.msra.mxu0 0
        %2104 = vmatpush.bf16.msra.mxu0 0
        %2105 = vmatpush.bf16.msra.mxu0 0
        %2106 = vmatpush.bf16.msra.mxu0 0
        %2107 = vmatpush.bf16.msra.mxu0 %v1611
        %2108 = vmatpush.bf16.msra.mxu0 %v1547
        %2109 = vmatpush.bf16.msra.mxu0 %v1483
        %2110 = vmatpush.bf16.msra.mxu0 %v1419
        %2111 = vmatmul.bf16.gmra.mxu0 %v1919
        %v2112 = vpop.f32.mrf.mxu0
        %v2113 = vadd.f32 %v523, %v2112
        %v2114 = vpop.f32.mrf.mxu0
        %2115 = vdwg.mxu0
        %2116 = vmatpush.bf16.msra.mxu0 0
        %2117 = vmatpush.bf16.msra.mxu0 0
        %2118 = vmatpush.bf16.msra.mxu0 0
        %2119 = vmatpush.bf16.msra.mxu0 0
        %2120 = vmatpush.bf16.msra.mxu0 %v1612
        %2121 = vmatpush.bf16.msra.mxu0 %v1548
        %2122 = vmatpush.bf16.msra.mxu0 %v1484
        %2123 = vmatpush.bf16.msra.mxu0 %v1420
        %2124 = vmatmul.bf16.gmra.mxu0 %v1919
        %v2125 = vpop.f32.mrf.mxu0
        %v2126 = vadd.f32 %v524, %v2125
        %v2127 = vpop.f32.mrf.mxu0
        %2128 = vdwg.mxu0
        %2129 = vmatpush.bf16.msra.mxu0 0
        %2130 = vmatpush.bf16.msra.mxu0 0
        %2131 = vmatpush.bf16.msra.mxu0 0
        %2132 = vmatpush.bf16.msra.mxu0 0
        %2133 = vmatpush.bf16.msra.mxu0 %v1613
        %2134 = vmatpush.bf16.msra.mxu0 %v1549
        %2135 = vmatpush.bf16.msra.mxu0 %v1485
        %2136 = vmatpush.bf16.msra.mxu0 %v1421
        %2137 = vmatmul.bf16.gmra.mxu0 %v1919
        %v2138 = vpop.f32.mrf.mxu0
        %v2139 = vadd.f32 %v525, %v2138
        %v2140 = vpop.f32.mrf.mxu0
        %2141 = vdwg.mxu0
        %2142 = vmatpush.bf16.msra.mxu0 0
        %2143 = vmatpush.bf16.msra.mxu0 0
        %2144 = vmatpush.bf16.msra.mxu0 0
        %2145 = vmatpush.bf16.msra.mxu0 0
        %2146 = vmatpush.bf16.msra.mxu0 %v1614
        %2147 = vmatpush.bf16.msra.mxu0 %v1550
        %2148 = vmatpush.bf16.msra.mxu0 %v1486
        %2149 = vmatpush.bf16.msra.mxu0 %v1422
        %2150 = vmatmul.bf16.gmra.mxu0 %v1919
        %v2151 = vpop.f32.mrf.mxu0
        %v2152 = vadd.f32 %v526, %v2151
        %v2153 = vpop.f32.mrf.mxu0
        %2154 = vdwg.mxu0
        %2155 = vmatpush.bf16.msra.mxu0 0
        %2156 = vmatpush.bf16.msra.mxu0 0
        %2157 = vmatpush.bf16.msra.mxu0 0
        %2158 = vmatpush.bf16.msra.mxu0 0
        %2159 = vmatpush.bf16.msra.mxu0 %v1615
        %2160 = vmatpush.bf16.msra.mxu0 %v1551
        %2161 = vmatpush.bf16.msra.mxu0 %v1487
        %2162 = vmatpush.bf16.msra.mxu0 %v1423
        %2163 = vmatmul.bf16.gmra.mxu0 %v1919
        %v2164 = vpop.f32.mrf.mxu0
        %v2165 = vadd.f32 %v527, %v2164
        %v2166 = vpop.f32.mrf.mxu0
        %2167 = vdwg.mxu0
        %2168 = vmatpush.bf16.msra.mxu0 0
        %2169 = vmatpush.bf16.msra.mxu0 0
        %2170 = vmatpush.bf16.msra.mxu0 0
        %2171 = vmatpush.bf16.msra.mxu0 0
        %2172 = vmatpush.bf16.msra.mxu0 %v1616
        %2173 = vmatpush.bf16.msra.mxu0 %v1552
        %2174 = vmatpush.bf16.msra.mxu0 %v1488
        %2175 = vmatpush.bf16.msra.mxu0 %v1424
        %2176 = vmatmul.bf16.gmra.mxu0 %v1919
        %v2177 = vpop.f32.mrf.mxu0
        %v2178 = vadd.f32 %v528, %v2177
        %v2179 = vpop.f32.mrf.mxu0
        %2180 = vdwg.mxu0
        %2181 = vmatpush.bf16.msra.mxu0 0
        %2182 = vmatpush.bf16.msra.mxu0 0
        %2183 = vmatpush.bf16.msra.mxu0 0
        %2184 = vmatpush.bf16.msra.mxu0 0
        %2185 = vmatpush.bf16.msra.mxu0 %v1617
        %2186 = vmatpush.bf16.msra.mxu0 %v1553
        %2187 = vmatpush.bf16.msra.mxu0 %v1489
        %2188 = vmatpush.bf16.msra.mxu0 %v1425
        %2189 = vmatmul.bf16.gmra.mxu0 %v1919
        %v2190 = vpop.f32.mrf.mxu0
        %v2191 = vadd.f32 %v529, %v2190
        %v2192 = vpop.f32.mrf.mxu0
        %2193 = vdwg.mxu0
        %2194 = vmatpush.bf16.msra.mxu0 0
        %2195 = vmatpush.bf16.msra.mxu0 0
        %2196 = vmatpush.bf16.msra.mxu0 0
        %2197 = vmatpush.bf16.msra.mxu0 0
        %2198 = vmatpush.bf16.msra.mxu0 %v1618
        %2199 = vmatpush.bf16.msra.mxu0 %v1554
        %2200 = vmatpush.bf16.msra.mxu0 %v1490
        %2201 = vmatpush.bf16.msra.mxu0 %v1426
        %2202 = vmatmul.bf16.gmra.mxu0 %v1919
        %v2203 = vpop.f32.mrf.mxu0
        %v2204 = vadd.f32 %v530, %v2203
        %v2205 = vpop.f32.mrf.mxu0
        %2206 = vdwg.mxu0
        %2207 = vmatpush.bf16.msra.mxu0 0
        %2208 = vmatpush.bf16.msra.mxu0 0
        %2209 = vmatpush.bf16.msra.mxu0 0
        %2210 = vmatpush.bf16.msra.mxu0 0
        %2211 = vmatpush.bf16.msra.mxu0 %v1619
        %2212 = vmatpush.bf16.msra.mxu0 %v1555
        %2213 = vmatpush.bf16.msra.mxu0 %v1491
        %2214 = vmatpush.bf16.msra.mxu0 %v1427
        %2215 = vmatmul.bf16.gmra.mxu0 %v1919
        %v2216 = vpop.f32.mrf.mxu0
        %v2217 = vadd.f32 %v531, %v2216
        %v2218 = vpop.f32.mrf.mxu0
        %2219 = vdwg.mxu0
        %2220 = vmatpush.bf16.msra.mxu0 0
        %2221 = vmatpush.bf16.msra.mxu0 0
        %2222 = vmatpush.bf16.msra.mxu0 0
        %2223 = vmatpush.bf16.msra.mxu0 0
        %2224 = vmatpush.bf16.msra.mxu0 %v1620
        %2225 = vmatpush.bf16.msra.mxu0 %v1556
        %2226 = vmatpush.bf16.msra.mxu0 %v1492
        %2227 = vmatpush.bf16.msra.mxu0 %v1428
        %2228 = vmatmul.bf16.gmra.mxu0 %v1919
        %v2229 = vpop.f32.mrf.mxu0
        %v2230 = vadd.f32 %v532, %v2229
        %v2231 = vpop.f32.mrf.mxu0
        %2232 = vdwg.mxu0
        %2233 = vmatpush.bf16.msra.mxu0 0
        %2234 = vmatpush.bf16.msra.mxu0 0
        %2235 = vmatpush.bf16.msra.mxu0 0
        %2236 = vmatpush.bf16.msra.mxu0 0
        %2237 = vmatpush.bf16.msra.mxu0 %v1621
        %2238 = vmatpush.bf16.msra.mxu0 %v1557
        %2239 = vmatpush.bf16.msra.mxu0 %v1493
        %2240 = vmatpush.bf16.msra.mxu0 %v1429
        %2241 = vmatmul.bf16.gmra.mxu0 %v1919
        %v2242 = vpop.f32.mrf.mxu0
        %v2243 = vadd.f32 %v533, %v2242
        %v2244 = vpop.f32.mrf.mxu0
        %2245 = vdwg.mxu0
        %2246 = vmatpush.bf16.msra.mxu0 0
        %2247 = vmatpush.bf16.msra.mxu0 0
        %2248 = vmatpush.bf16.msra.mxu0 0
        %2249 = vmatpush.bf16.msra.mxu0 0
        %2250 = vmatpush.bf16.msra.mxu0 %v1622
        %2251 = vmatpush.bf16.msra.mxu0 %v1558
        %2252 = vmatpush.bf16.msra.mxu0 %v1494
        %2253 = vmatpush.bf16.msra.mxu0 %v1430
        %2254 = vmatmul.bf16.gmra.mxu0 %v1919
        %v2255 = vpop.f32.mrf.mxu0
        %v2256 = vadd.f32 %v534, %v2255
        %v2257 = vpop.f32.mrf.mxu0
        %2258 = vdwg.mxu0
        %2259 = vmatpush.bf16.msra.mxu0 0
        %2260 = vmatpush.bf16.msra.mxu0 0
        %2261 = vmatpush.bf16.msra.mxu0 0
        %2262 = vmatpush.bf16.msra.mxu0 0
        %2263 = vmatpush.bf16.msra.mxu0 %v1623
        %2264 = vmatpush.bf16.msra.mxu0 %v1559
        %2265 = vmatpush.bf16.msra.mxu0 %v1495
        %2266 = vmatpush.bf16.msra.mxu0 %v1431
        %2267 = vmatmul.bf16.gmra.mxu0 %v1919
        %v2268 = vpop.f32.mrf.mxu0
        %v2269 = vadd.f32 %v535, %v2268
        %v2270 = vpop.f32.mrf.mxu0
        %2271 = vdwg.mxu0
        %2272 = vmatpush.bf16.msra.mxu0 0
        %2273 = vmatpush.bf16.msra.mxu0 0
        %2274 = vmatpush.bf16.msra.mxu0 0
        %2275 = vmatpush.bf16.msra.mxu0 0
        %2276 = vmatpush.bf16.msra.mxu0 %v1624
        %2277 = vmatpush.bf16.msra.mxu0 %v1560
        %2278 = vmatpush.bf16.msra.mxu0 %v1496
        %2279 = vmatpush.bf16.msra.mxu0 %v1432
        %2280 = vmatmul.bf16.gmra.mxu0 %v1919
        %v2281 = vpop.f32.mrf.mxu0
        %v2282 = vadd.f32 %v536, %v2281
        %v2283 = vpop.f32.mrf.mxu0
        %2284 = vdwg.mxu0
        %2285 = vmatpush.bf16.msra.mxu0 0
        %2286 = vmatpush.bf16.msra.mxu0 0
        %2287 = vmatpush.bf16.msra.mxu0 0
        %2288 = vmatpush.bf16.msra.mxu0 0
        %2289 = vmatpush.bf16.msra.mxu0 %v1625
        %2290 = vmatpush.bf16.msra.mxu0 %v1561
        %2291 = vmatpush.bf16.msra.mxu0 %v1497
        %2292 = vmatpush.bf16.msra.mxu0 %v1433
        %2293 = vmatmul.bf16.gmra.mxu0 %v1919
        %v2294 = vpop.f32.mrf.mxu0
        %v2295 = vadd.f32 %v537, %v2294
        %v2296 = vpop.f32.mrf.mxu0
        %2297 = vdwg.mxu0
        %2298 = vmatpush.bf16.msra.mxu0 0
        %2299 = vmatpush.bf16.msra.mxu0 0
        %2300 = vmatpush.bf16.msra.mxu0 0
        %2301 = vmatpush.bf16.msra.mxu0 0
        %2302 = vmatpush.bf16.msra.mxu0 %v1626
        %2303 = vmatpush.bf16.msra.mxu0 %v1562
        %2304 = vmatpush.bf16.msra.mxu0 %v1498
        %2305 = vmatpush.bf16.msra.mxu0 %v1434
        %2306 = vmatmul.bf16.gmra.mxu0 %v1919
        %v2307 = vpop.f32.mrf.mxu0
        %v2308 = vadd.f32 %v538, %v2307
        %v2309 = vpop.f32.mrf.mxu0
        %2310 = vdwg.mxu0
        %2311 = vmatpush.bf16.msra.mxu0 0
        %2312 = vmatpush.bf16.msra.mxu0 0
        %2313 = vmatpush.bf16.msra.mxu0 0
        %2314 = vmatpush.bf16.msra.mxu0 0
        %2315 = vmatpush.bf16.msra.mxu0 %v1627
        %2316 = vmatpush.bf16.msra.mxu0 %v1563
        %2317 = vmatpush.bf16.msra.mxu0 %v1499
        %2318 = vmatpush.bf16.msra.mxu0 %v1435
        %2319 = vmatmul.bf16.gmra.mxu0 %v1919
        %v2320 = vpop.f32.mrf.mxu0
        %v2321 = vadd.f32 %v539, %v2320
        %v2322 = vpop.f32.mrf.mxu0
        %2323 = vdwg.mxu0
        %2324 = vmatpush.bf16.msra.mxu0 0
        %2325 = vmatpush.bf16.msra.mxu0 0
        %2326 = vmatpush.bf16.msra.mxu0 0
        %2327 = vmatpush.bf16.msra.mxu0 0
        %2328 = vmatpush.bf16.msra.mxu0 %v1628
        %2329 = vmatpush.bf16.msra.mxu0 %v1564
        %2330 = vmatpush.bf16.msra.mxu0 %v1500
        %2331 = vmatpush.bf16.msra.mxu0 %v1436
        %2332 = vmatmul.bf16.gmra.mxu0 %v1919
        %v2333 = vpop.f32.mrf.mxu0
        %v2334 = vadd.f32 %v540, %v2333
        %v2335 = vpop.f32.mrf.mxu0
        %2336 = vdwg.mxu0
        %2337 = vmatpush.bf16.msra.mxu0 0
        %2338 = vmatpush.bf16.msra.mxu0 0
        %2339 = vmatpush.bf16.msra.mxu0 0
        %2340 = vmatpush.bf16.msra.mxu0 0
        %2341 = vmatpush.bf16.msra.mxu0 %v1629
        %2342 = vmatpush.bf16.msra.mxu0 %v1565
        %2343 = vmatpush.bf16.msra.mxu0 %v1501
        %2344 = vmatpush.bf16.msra.mxu0 %v1437
        %2345 = vmatmul.bf16.gmra.mxu0 %v1919
        %v2346 = vpop.f32.mrf.mxu0
        %v2347 = vadd.f32 %v541, %v2346
        %v2348 = vpop.f32.mrf.mxu0
        %2349 = vdwg.mxu0
        %2350 = vmatpush.bf16.msra.mxu0 0
        %2351 = vmatpush.bf16.msra.mxu0 0
        %2352 = vmatpush.bf16.msra.mxu0 0
        %2353 = vmatpush.bf16.msra.mxu0 0
        %2354 = vmatpush.bf16.msra.mxu0 %v1630
        %2355 = vmatpush.bf16.msra.mxu0 %v1566
        %2356 = vmatpush.bf16.msra.mxu0 %v1502
        %2357 = vmatpush.bf16.msra.mxu0 %v1438
        %2358 = vmatmul.bf16.gmra.mxu0 %v1919
        %v2359 = vpop.f32.mrf.mxu0
        %v2360 = vadd.f32 %v542, %v2359
        %v2361 = vpop.f32.mrf.mxu0
        %2362 = vdwg.mxu0
        %2363 = vmatpush.bf16.msra.mxu0 0
        %2364 = vmatpush.bf16.msra.mxu0 0
        %2365 = vmatpush.bf16.msra.mxu0 0
        %2366 = vmatpush.bf16.msra.mxu0 0
        %2367 = vmatpush.bf16.msra.mxu0 %v1631
        %2368 = vmatpush.bf16.msra.mxu0 %v1567
        %2369 = vmatpush.bf16.msra.mxu0 %v1503
        %2370 = vmatpush.bf16.msra.mxu0 %v1439
        %2371 = vmatmul.bf16.gmra.mxu0 %v1919
        %v2372 = vpop.f32.mrf.mxu0
        %v2373 = vadd.f32 %v543, %v2372
        %v2374 = vpop.f32.mrf.mxu0
        %2375 = vdwg.mxu0
        %2376 = vmatpush.bf16.msra.mxu0 0
        %2377 = vmatpush.bf16.msra.mxu0 0
        %2378 = vmatpush.bf16.msra.mxu0 0
        %2379 = vmatpush.bf16.msra.mxu0 0
        %2380 = vmatpush.bf16.msra.mxu0 %v1632
        %2381 = vmatpush.bf16.msra.mxu0 %v1568
        %2382 = vmatpush.bf16.msra.mxu0 %v1504
        %2383 = vmatpush.bf16.msra.mxu0 %v1440
        %2384 = vmatmul.bf16.gmra.mxu0 %v1919
        %v2385 = vpop.f32.mrf.mxu0
        %v2386 = vadd.f32 %v544, %v2385
        %v2387 = vpop.f32.mrf.mxu0
        %2388 = vdwg.mxu0
        %2389 = vmatpush.bf16.msra.mxu0 0
        %2390 = vmatpush.bf16.msra.mxu0 0
        %2391 = vmatpush.bf16.msra.mxu0 0
        %2392 = vmatpush.bf16.msra.mxu0 0
        %2393 = vmatpush.bf16.msra.mxu0 %v1633
        %2394 = vmatpush.bf16.msra.mxu0 %v1569
        %2395 = vmatpush.bf16.msra.mxu0 %v1505
        %2396 = vmatpush.bf16.msra.mxu0 %v1441
        %2397 = vmatmul.bf16.gmra.mxu0 %v1919
        %v2398 = vpop.f32.mrf.mxu0
        %v2399 = vadd.f32 %v545, %v2398
        %v2400 = vpop.f32.mrf.mxu0
        %2401 = vdwg.mxu0
        %2402 = vmatpush.bf16.msra.mxu0 0
        %2403 = vmatpush.bf16.msra.mxu0 0
        %2404 = vmatpush.bf16.msra.mxu0 0
        %2405 = vmatpush.bf16.msra.mxu0 0
        %2406 = vmatpush.bf16.msra.mxu0 %v1634
        %2407 = vmatpush.bf16.msra.mxu0 %v1570
        %2408 = vmatpush.bf16.msra.mxu0 %v1506
        %2409 = vmatpush.bf16.msra.mxu0 %v1442
        %2410 = vmatmul.bf16.gmra.mxu0 %v1919
        %v2411 = vpop.f32.mrf.mxu0
        %v2412 = vadd.f32 %v546, %v2411
        %v2413 = vpop.f32.mrf.mxu0
        %2414 = vdwg.mxu0
        %2415 = vmatpush.bf16.msra.mxu0 0
        %2416 = vmatpush.bf16.msra.mxu0 0
        %2417 = vmatpush.bf16.msra.mxu0 0
        %2418 = vmatpush.bf16.msra.mxu0 0
        %2419 = vmatpush.bf16.msra.mxu0 %v1635
        %2420 = vmatpush.bf16.msra.mxu0 %v1571
        %2421 = vmatpush.bf16.msra.mxu0 %v1507
        %2422 = vmatpush.bf16.msra.mxu0 %v1443
        %2423 = vmatmul.bf16.gmra.mxu0 %v1919
        %v2424 = vpop.f32.mrf.mxu0
        %v2425 = vadd.f32 %v547, %v2424
        %v2426 = vpop.f32.mrf.mxu0
        %2427 = vdwg.mxu0
        %2428 = vmatpush.bf16.msra.mxu0 0
        %2429 = vmatpush.bf16.msra.mxu0 0
        %2430 = vmatpush.bf16.msra.mxu0 0
        %2431 = vmatpush.bf16.msra.mxu0 0
        %2432 = vmatpush.bf16.msra.mxu0 %v1636
        %2433 = vmatpush.bf16.msra.mxu0 %v1572
        %2434 = vmatpush.bf16.msra.mxu0 %v1508
        %2435 = vmatpush.bf16.msra.mxu0 %v1444
        %2436 = vmatmul.bf16.gmra.mxu0 %v1919
        %v2437 = vpop.f32.mrf.mxu0
        %v2438 = vadd.f32 %v548, %v2437
        %v2439 = vpop.f32.mrf.mxu0
        %2440 = vdwg.mxu0
        %2441 = vmatpush.bf16.msra.mxu0 0
        %2442 = vmatpush.bf16.msra.mxu0 0
        %2443 = vmatpush.bf16.msra.mxu0 0
        %2444 = vmatpush.bf16.msra.mxu0 0
        %2445 = vmatpush.bf16.msra.mxu0 %v1637
        %2446 = vmatpush.bf16.msra.mxu0 %v1573
        %2447 = vmatpush.bf16.msra.mxu0 %v1509
        %2448 = vmatpush.bf16.msra.mxu0 %v1445
        %2449 = vmatmul.bf16.gmra.mxu0 %v1919
        %v2450 = vpop.f32.mrf.mxu0
        %v2451 = vadd.f32 %v549, %v2450
        %v2452 = vpop.f32.mrf.mxu0
        %2453 = vdwg.mxu0
        %2454 = vmatpush.bf16.msra.mxu0 0
        %2455 = vmatpush.bf16.msra.mxu0 0
        %2456 = vmatpush.bf16.msra.mxu0 0
        %2457 = vmatpush.bf16.msra.mxu0 0
        %2458 = vmatpush.bf16.msra.mxu0 %v1638
        %2459 = vmatpush.bf16.msra.mxu0 %v1574
        %2460 = vmatpush.bf16.msra.mxu0 %v1510
        %2461 = vmatpush.bf16.msra.mxu0 %v1446
        %2462 = vmatmul.bf16.gmra.mxu0 %v1919
        %v2463 = vpop.f32.mrf.mxu0
        %v2464 = vadd.f32 %v550, %v2463
        %v2465 = vpop.f32.mrf.mxu0
        %2466 = vdwg.mxu0
        %2467 = vmatpush.bf16.msra.mxu0 0
        %2468 = vmatpush.bf16.msra.mxu0 0
        %2469 = vmatpush.bf16.msra.mxu0 0
        %2470 = vmatpush.bf16.msra.mxu0 0
        %2471 = vmatpush.bf16.msra.mxu0 %v1639
        %2472 = vmatpush.bf16.msra.mxu0 %v1575
        %2473 = vmatpush.bf16.msra.mxu0 %v1511
        %2474 = vmatpush.bf16.msra.mxu0 %v1447
        %2475 = vmatmul.bf16.gmra.mxu0 %v1919
        %v2476 = vpop.f32.mrf.mxu0
        %v2477 = vadd.f32 %v551, %v2476
        %v2478 = vpop.f32.mrf.mxu0
        %2479 = vdwg.mxu0
        %2480 = vmatpush.bf16.msra.mxu0 0
        %2481 = vmatpush.bf16.msra.mxu0 0
        %2482 = vmatpush.bf16.msra.mxu0 0
        %2483 = vmatpush.bf16.msra.mxu0 0
        %2484 = vmatpush.bf16.msra.mxu0 %v1640
        %2485 = vmatpush.bf16.msra.mxu0 %v1576
        %2486 = vmatpush.bf16.msra.mxu0 %v1512
        %2487 = vmatpush.bf16.msra.mxu0 %v1448
        %2488 = vmatmul.bf16.gmra.mxu0 %v1919
        %v2489 = vpop.f32.mrf.mxu0
        %v2490 = vadd.f32 %v552, %v2489
        %v2491 = vpop.f32.mrf.mxu0
        %2492 = vdwg.mxu0
        %2493 = vmatpush.bf16.msra.mxu0 0
        %2494 = vmatpush.bf16.msra.mxu0 0
        %2495 = vmatpush.bf16.msra.mxu0 0
        %2496 = vmatpush.bf16.msra.mxu0 0
        %2497 = vmatpush.bf16.msra.mxu0 %v1641
        %2498 = vmatpush.bf16.msra.mxu0 %v1577
        %2499 = vmatpush.bf16.msra.mxu0 %v1513
        %2500 = vmatpush.bf16.msra.mxu0 %v1449
        %2501 = vmatmul.bf16.gmra.mxu0 %v1919
        %v2502 = vpop.f32.mrf.mxu0
        %v2503 = vadd.f32 %v553, %v2502
        %v2504 = vpop.f32.mrf.mxu0
        %2505 = vdwg.mxu0
        %2506 = vmatpush.bf16.msra.mxu0 0
        %2507 = vmatpush.bf16.msra.mxu0 0
        %2508 = vmatpush.bf16.msra.mxu0 0
        %2509 = vmatpush.bf16.msra.mxu0 0
        %2510 = vmatpush.bf16.msra.mxu0 %v1642
        %2511 = vmatpush.bf16.msra.mxu0 %v1578
        %2512 = vmatpush.bf16.msra.mxu0 %v1514
        %2513 = vmatpush.bf16.msra.mxu0 %v1450
        %2514 = vmatmul.bf16.gmra.mxu0 %v1919
        %v2515 = vpop.f32.mrf.mxu0
        %v2516 = vadd.f32 %v554, %v2515
        %v2517 = vpop.f32.mrf.mxu0
        %2518 = vdwg.mxu0
        %2519 = vmatpush.bf16.msra.mxu0 0
        %2520 = vmatpush.bf16.msra.mxu0 0
        %2521 = vmatpush.bf16.msra.mxu0 0
        %2522 = vmatpush.bf16.msra.mxu0 0
        %2523 = vmatpush.bf16.msra.mxu0 %v1643
        %2524 = vmatpush.bf16.msra.mxu0 %v1579
        %2525 = vmatpush.bf16.msra.mxu0 %v1515
        %2526 = vmatpush.bf16.msra.mxu0 %v1451
        %2527 = vmatmul.bf16.gmra.mxu0 %v1919
        %v2528 = vpop.f32.mrf.mxu0
        %v2529 = vadd.f32 %v555, %v2528
        %v2530 = vpop.f32.mrf.mxu0
        %2531 = vdwg.mxu0
        %2532 = vmatpush.bf16.msra.mxu0 0
        %2533 = vmatpush.bf16.msra.mxu0 0
        %2534 = vmatpush.bf16.msra.mxu0 0
        %2535 = vmatpush.bf16.msra.mxu0 0
        %2536 = vmatpush.bf16.msra.mxu0 %v1644
        %2537 = vmatpush.bf16.msra.mxu0 %v1580
        %2538 = vmatpush.bf16.msra.mxu0 %v1516
        %2539 = vmatpush.bf16.msra.mxu0 %v1452
        %2540 = vmatmul.bf16.gmra.mxu0 %v1919
        %v2541 = vpop.f32.mrf.mxu0
        %v2542 = vadd.f32 %v556, %v2541
        %v2543 = vpop.f32.mrf.mxu0
        %2544 = vdwg.mxu0
        %2545 = vmatpush.bf16.msra.mxu0 0
        %2546 = vmatpush.bf16.msra.mxu0 0
        %2547 = vmatpush.bf16.msra.mxu0 0
        %2548 = vmatpush.bf16.msra.mxu0 0
        %2549 = vmatpush.bf16.msra.mxu0 %v1645
        %2550 = vmatpush.bf16.msra.mxu0 %v1581
        %2551 = vmatpush.bf16.msra.mxu0 %v1517
        %2552 = vmatpush.bf16.msra.mxu0 %v1453
        %2553 = vmatmul.bf16.gmra.mxu0 %v1919
        %v2554 = vpop.f32.mrf.mxu0
        %v2555 = vadd.f32 %v557, %v2554
        %v2556 = vpop.f32.mrf.mxu0
        %2557 = vdwg.mxu0
        %2558 = vmatpush.bf16.msra.mxu0 0
        %2559 = vmatpush.bf16.msra.mxu0 0
        %2560 = vmatpush.bf16.msra.mxu0 0
        %2561 = vmatpush.bf16.msra.mxu0 0
        %2562 = vmatpush.bf16.msra.mxu0 %v1646
        %2563 = vmatpush.bf16.msra.mxu0 %v1582
        %2564 = vmatpush.bf16.msra.mxu0 %v1518
        %2565 = vmatpush.bf16.msra.mxu0 %v1454
        %2566 = vmatmul.bf16.gmra.mxu0 %v1919
        %v2567 = vpop.f32.mrf.mxu0
        %v2568 = vadd.f32 %v558, %v2567
        %v2569 = vpop.f32.mrf.mxu0
        %2570 = vdwg.mxu0
        %2571 = vmatpush.bf16.msra.mxu0 0
        %2572 = vmatpush.bf16.msra.mxu0 0
        %2573 = vmatpush.bf16.msra.mxu0 0
        %2574 = vmatpush.bf16.msra.mxu0 0
        %2575 = vmatpush.bf16.msra.mxu0 %v1647
        %2576 = vmatpush.bf16.msra.mxu0 %v1583
        %2577 = vmatpush.bf16.msra.mxu0 %v1519
        %2578 = vmatpush.bf16.msra.mxu0 %v1455
        %2579 = vmatmul.bf16.gmra.mxu0 %v1919
        %v2580 = vpop.f32.mrf.mxu0
        %v2581 = vadd.f32 %v559, %v2580
        %v2582 = vpop.f32.mrf.mxu0
        %2583 = vdwg.mxu0
        %2584 = vmatpush.bf16.msra.mxu0 0
        %2585 = vmatpush.bf16.msra.mxu0 0
        %2586 = vmatpush.bf16.msra.mxu0 0
        %2587 = vmatpush.bf16.msra.mxu0 0
        %2588 = vmatpush.bf16.msra.mxu0 %v1648
        %2589 = vmatpush.bf16.msra.mxu0 %v1584
        %2590 = vmatpush.bf16.msra.mxu0 %v1520
        %2591 = vmatpush.bf16.msra.mxu0 %v1456
        %2592 = vmatmul.bf16.gmra.mxu0 %v1919
        %v2593 = vpop.f32.mrf.mxu0
        %v2594 = vadd.f32 %v560, %v2593
        %v2595 = vpop.f32.mrf.mxu0
        %2596 = vdwg.mxu0
        %2597 = vmatpush.bf16.msra.mxu0 0
        %2598 = vmatpush.bf16.msra.mxu0 0
        %2599 = vmatpush.bf16.msra.mxu0 0
        %2600 = vmatpush.bf16.msra.mxu0 0
        %2601 = vmatpush.bf16.msra.mxu0 %v1649
        %2602 = vmatpush.bf16.msra.mxu0 %v1585
        %2603 = vmatpush.bf16.msra.mxu0 %v1521
        %2604 = vmatpush.bf16.msra.mxu0 %v1457
        %2605 = vmatmul.bf16.gmra.mxu0 %v1919
        %v2606 = vpop.f32.mrf.mxu0
        %v2607 = vadd.f32 %v561, %v2606
        %v2608 = vpop.f32.mrf.mxu0
        %2609 = vdwg.mxu0
        %2610 = vmatpush.bf16.msra.mxu0 0
        %2611 = vmatpush.bf16.msra.mxu0 0
        %2612 = vmatpush.bf16.msra.mxu0 0
        %2613 = vmatpush.bf16.msra.mxu0 0
        %2614 = vmatpush.bf16.msra.mxu0 %v1650
        %2615 = vmatpush.bf16.msra.mxu0 %v1586
        %2616 = vmatpush.bf16.msra.mxu0 %v1522
        %2617 = vmatpush.bf16.msra.mxu0 %v1458
        %2618 = vmatmul.bf16.gmra.mxu0 %v1919
        %v2619 = vpop.f32.mrf.mxu0
        %v2620 = vadd.f32 %v562, %v2619
        %v2621 = vpop.f32.mrf.mxu0
        %2622 = vdwg.mxu0
        %2623 = vmatpush.bf16.msra.mxu0 0
        %2624 = vmatpush.bf16.msra.mxu0 0
        %2625 = vmatpush.bf16.msra.mxu0 0
        %2626 = vmatpush.bf16.msra.mxu0 0
        %2627 = vmatpush.bf16.msra.mxu0 %v1651
        %2628 = vmatpush.bf16.msra.mxu0 %v1587
        %2629 = vmatpush.bf16.msra.mxu0 %v1523
        %2630 = vmatpush.bf16.msra.mxu0 %v1459
        %2631 = vmatmul.bf16.gmra.mxu0 %v1919
        %v2632 = vpop.f32.mrf.mxu0
        %v2633 = vadd.f32 %v563, %v2632
        %v2634 = vpop.f32.mrf.mxu0
        %2635 = vdwg.mxu0
        %2636 = vmatpush.bf16.msra.mxu0 0
        %2637 = vmatpush.bf16.msra.mxu0 0
        %2638 = vmatpush.bf16.msra.mxu0 0
        %2639 = vmatpush.bf16.msra.mxu0 0
        %2640 = vmatpush.bf16.msra.mxu0 %v1652
        %2641 = vmatpush.bf16.msra.mxu0 %v1588
        %2642 = vmatpush.bf16.msra.mxu0 %v1524
        %2643 = vmatpush.bf16.msra.mxu0 %v1460
        %2644 = vmatmul.bf16.gmra.mxu0 %v1919
        %v2645 = vpop.f32.mrf.mxu0
        %v2646 = vadd.f32 %v564, %v2645
        %v2647 = vpop.f32.mrf.mxu0
        %2648 = vdwg.mxu0
        %2649 = vmatpush.bf16.msra.mxu0 0
        %2650 = vmatpush.bf16.msra.mxu0 0
        %2651 = vmatpush.bf16.msra.mxu0 0
        %2652 = vmatpush.bf16.msra.mxu0 0
        %2653 = vmatpush.bf16.msra.mxu0 %v1653
        %2654 = vmatpush.bf16.msra.mxu0 %v1589
        %2655 = vmatpush.bf16.msra.mxu0 %v1525
        %2656 = vmatpush.bf16.msra.mxu0 %v1461
        %2657 = vmatmul.bf16.gmra.mxu0 %v1919
        %v2658 = vpop.f32.mrf.mxu0
        %v2659 = vadd.f32 %v565, %v2658
        %v2660 = vpop.f32.mrf.mxu0
        %2661 = vdwg.mxu0
        %2662 = vmatpush.bf16.msra.mxu0 0
        %2663 = vmatpush.bf16.msra.mxu0 0
        %2664 = vmatpush.bf16.msra.mxu0 0
        %2665 = vmatpush.bf16.msra.mxu0 0
        %2666 = vmatpush.bf16.msra.mxu0 %v1654
        %2667 = vmatpush.bf16.msra.mxu0 %v1590
        %2668 = vmatpush.bf16.msra.mxu0 %v1526
        %2669 = vmatpush.bf16.msra.mxu0 %v1462
        %2670 = vmatmul.bf16.gmra.mxu0 %v1919
        %v2671 = vpop.f32.mrf.mxu0
        %v2672 = vadd.f32 %v566, %v2671
        %v2673 = vpop.f32.mrf.mxu0
        %2674 = vdwg.mxu0
        %2675 = vmatpush.bf16.msra.mxu0 0
        %2676 = vmatpush.bf16.msra.mxu0 0
        %2677 = vmatpush.bf16.msra.mxu0 0
        %2678 = vmatpush.bf16.msra.mxu0 0
        %2679 = vmatpush.bf16.msra.mxu0 %v1655
        %2680 = vmatpush.bf16.msra.mxu0 %v1591
        %2681 = vmatpush.bf16.msra.mxu0 %v1527
        %2682 = vmatpush.bf16.msra.mxu0 %v1463
        %2683 = vmatmul.bf16.gmra.mxu0 %v1919
        %v2684 = vpop.f32.mrf.mxu0
        %v2685 = vadd.f32 %v567, %v2684
        %v2686 = vpop.f32.mrf.mxu0
        %2687 = vdwg.mxu0
        %2688 = vmatpush.bf16.msra.mxu0 0
        %2689 = vmatpush.bf16.msra.mxu0 0
        %2690 = vmatpush.bf16.msra.mxu0 0
        %2691 = vmatpush.bf16.msra.mxu0 0
        %2692 = vmatpush.bf16.msra.mxu0 %v1656
        %2693 = vmatpush.bf16.msra.mxu0 %v1592
        %2694 = vmatpush.bf16.msra.mxu0 %v1528
        %2695 = vmatpush.bf16.msra.mxu0 %v1464
        %2696 = vmatmul.bf16.gmra.mxu0 %v1919
        %v2697 = vpop.f32.mrf.mxu0
        %v2698 = vadd.f32 %v568, %v2697
        %v2699 = vpop.f32.mrf.mxu0
        %2700 = vdwg.mxu0
        %2701 = vmatpush.bf16.msra.mxu0 0
        %2702 = vmatpush.bf16.msra.mxu0 0
        %2703 = vmatpush.bf16.msra.mxu0 0
        %2704 = vmatpush.bf16.msra.mxu0 0
        %2705 = vmatpush.bf16.msra.mxu0 %v1657
        %2706 = vmatpush.bf16.msra.mxu0 %v1593
        %2707 = vmatpush.bf16.msra.mxu0 %v1529
        %2708 = vmatpush.bf16.msra.mxu0 %v1465
        %2709 = vmatmul.bf16.gmra.mxu0 %v1919
        %v2710 = vpop.f32.mrf.mxu0
        %v2711 = vadd.f32 %v569, %v2710
        %v2712 = vpop.f32.mrf.mxu0
        %2713 = vdwg.mxu0
        %2714 = vmatpush.bf16.msra.mxu0 0
        %2715 = vmatpush.bf16.msra.mxu0 0
        %2716 = vmatpush.bf16.msra.mxu0 0
        %2717 = vmatpush.bf16.msra.mxu0 0
        %2718 = vmatpush.bf16.msra.mxu0 %v1658
        %2719 = vmatpush.bf16.msra.mxu0 %v1594
        %2720 = vmatpush.bf16.msra.mxu0 %v1530
        %2721 = vmatpush.bf16.msra.mxu0 %v1466
        %2722 = vmatmul.bf16.gmra.mxu0 %v1919
        %v2723 = vpop.f32.mrf.mxu0
        %v2724 = vadd.f32 %v570, %v2723
        %v2725 = vpop.f32.mrf.mxu0
        %2726 = vdwg.mxu0
        %2727 = vmatpush.bf16.msra.mxu0 0
        %2728 = vmatpush.bf16.msra.mxu0 0
        %2729 = vmatpush.bf16.msra.mxu0 0
        %2730 = vmatpush.bf16.msra.mxu0 0
        %2731 = vmatpush.bf16.msra.mxu0 %v1659
        %2732 = vmatpush.bf16.msra.mxu0 %v1595
        %2733 = vmatpush.bf16.msra.mxu0 %v1531
        %2734 = vmatpush.bf16.msra.mxu0 %v1467
        %2735 = vmatmul.bf16.gmra.mxu0 %v1919
        %v2736 = vpop.f32.mrf.mxu0
        %v2737 = vadd.f32 %v571, %v2736
        %v2738 = vpop.f32.mrf.mxu0
        %2739 = vdwg.mxu0
        %2740 = vmatpush.bf16.msra.mxu0 0
        %2741 = vmatpush.bf16.msra.mxu0 0
        %2742 = vmatpush.bf16.msra.mxu0 0
        %2743 = vmatpush.bf16.msra.mxu0 0
        %2744 = vmatpush.bf16.msra.mxu0 %v1660
        %2745 = vmatpush.bf16.msra.mxu0 %v1596
        %2746 = vmatpush.bf16.msra.mxu0 %v1532
        %2747 = vmatpush.bf16.msra.mxu0 %v1468
        %2748 = vmatmul.bf16.gmra.mxu0 %v1919
        %v2749 = vpop.f32.mrf.mxu0
        %v2750 = vadd.f32 %v572, %v2749
        %v2751 = vpop.f32.mrf.mxu0
        %2752 = vdwg.mxu0
        %v2753 = vmax.f32 %v1931, 0.0
        %v2754 = vmax.f32 %v1944, 0.0
        %v2755 = vmax.f32 %v1957, 0.0
        %v2756 = vmax.f32 %v1970, 0.0
        %v2757 = vmax.f32 %v1983, 0.0
        %v2758 = vmax.f32 %v1996, 0.0
        %v2759 = vmax.f32 %v2009, 0.0
        %v2760 = vmax.f32 %v2022, 0.0
        %v2761 = vmax.f32 %v2035, 0.0
        %v2762 = vmax.f32 %v2048, 0.0
        %v2763 = vmax.f32 %v2061, 0.0
        %v2764 = vmax.f32 %v2074, 0.0
        %v2765 = vmax.f32 %v2087, 0.0
        %v2766 = vmax.f32 %v2100, 0.0
        %v2767 = vmax.f32 %v2113, 0.0
        %v2768 = vmax.f32 %v2126, 0.0
        %v2769 = vmax.f32 %v2139, 0.0
        %v2770 = vmax.f32 %v2152, 0.0
        %v2771 = vmax.f32 %v2165, 0.0
        %v2772 = vmax.f32 %v2178, 0.0
        %v2773 = vmax.f32 %v2191, 0.0
        %v2774 = vmax.f32 %v2204, 0.0
        %v2775 = vmax.f32 %v2217, 0.0
        %v2776 = vmax.f32 %v2230, 0.0
        %v2777 = vmax.f32 %v2243, 0.0
        %v2778 = vmax.f32 %v2256, 0.0
        %v2779 = vmax.f32 %v2269, 0.0
        %v2780 = vmax.f32 %v2282, 0.0
        %v2781 = vmax.f32 %v2295, 0.0
        %v2782 = vmax.f32 %v2308, 0.0
        %v2783 = vmax.f32 %v2321, 0.0
        %v2784 = vmax.f32 %v2334, 0.0
        %v2785 = vmax.f32 %v2347, 0.0
        %v2786 = vmax.f32 %v2360, 0.0
        %v2787 = vmax.f32 %v2373, 0.0
        %v2788 = vmax.f32 %v2386, 0.0
        %v2789 = vmax.f32 %v2399, 0.0
        %v2790 = vmax.f32 %v2412, 0.0
        %v2791 = vmax.f32 %v2425, 0.0
        %v2792 = vmax.f32 %v2438, 0.0
        %v2793 = vmax.f32 %v2451, 0.0
        %v2794 = vmax.f32 %v2464, 0.0
        %v2795 = vmax.f32 %v2477, 0.0
        %v2796 = vmax.f32 %v2490, 0.0
        %v2797 = vmax.f32 %v2503, 0.0
        %v2798 = vmax.f32 %v2516, 0.0
        %v2799 = vmax.f32 %v2529, 0.0
        %v2800 = vmax.f32 %v2542, 0.0
        %v2801 = vmax.f32 %v2555, 0.0
        %v2802 = vmax.f32 %v2568, 0.0
        %v2803 = vmax.f32 %v2581, 0.0
        %v2804 = vmax.f32 %v2594, 0.0
        %v2805 = vmax.f32 %v2607, 0.0
        %v2806 = vmax.f32 %v2620, 0.0
        %v2807 = vmax.f32 %v2633, 0.0
        %v2808 = vmax.f32 %v2646, 0.0
        %v2809 = vmax.f32 %v2659, 0.0
        %v2810 = vmax.f32 %v2672, 0.0
        %v2811 = vmax.f32 %v2685, 0.0
        %v2812 = vmax.f32 %v2698, 0.0
        %v2813 = vmax.f32 %v2711, 0.0
        %v2814 = vmax.f32 %v2724, 0.0
        %v2815 = vmax.f32 %v2737, 0.0
        %v2816 = vmax.f32 %v2750, 0.0
        %2817 = vst [vmem:[%s233] sm:$0xff] %v2753
        %2818 = vst [vmem:[%s233 + $0x8] sm:$0xff] %v2754
        %2819 = vst [vmem:[%s233 + $0x10] sm:$0xff] %v2755
        %2820 = vst [vmem:[%s233 + $0x18] sm:$0xff] %v2756
        %2821 = vst [vmem:[%s233 + $0x20] sm:$0xff] %v2757
        %2822 = vst [vmem:[%s233 + $0x28] sm:$0xff] %v2758
        %2823 = vst [vmem:[%s233 + $0x30] sm:$0xff] %v2759
        %2824 = vst [vmem:[%s233 + $0x38] sm:$0xff] %v2760
        %2825 = vst [vmem:[%s233 + $0x40] sm:$0xff] %v2761
        %2826 = vst [vmem:[%s233 + $0x48] sm:$0xff] %v2762
        %2827 = vst [vmem:[%s233 + $0x50] sm:$0xff] %v2763
        %2828 = vst [vmem:[%s233 + $0x58] sm:$0xff] %v2764
        %2829 = vst [vmem:[%s233 + $0x60] sm:$0xff] %v2765
        %2830 = vst [vmem:[%s233 + $0x68] sm:$0xff] %v2766
        %2831 = vst [vmem:[%s233 + $0x70] sm:$0xff] %v2767
        %2832 = vst [vmem:[%s233 + $0x78] sm:$0xff] %v2768
        %2833 = vst [vmem:[%s233 + $0x80] sm:$0xff] %v2769
        %2834 = vst [vmem:[%s233 + $0x88] sm:$0xff] %v2770
        %2835 = vst [vmem:[%s233 + $0x90] sm:$0xff] %v2771
        %2836 = vst [vmem:[%s233 + $0x98] sm:$0xff] %v2772
        %2837 = vst [vmem:[%s233 + $0xa0] sm:$0xff] %v2773
        %2838 = vst [vmem:[%s233 + $0xa8] sm:$0xff] %v2774
        %2839 = vst [vmem:[%s233 + $0xb0] sm:$0xff] %v2775
        %2840 = vst [vmem:[%s233 + $0xb8] sm:$0xff] %v2776
        %2841 = vst [vmem:[%s233 + $0xc0] sm:$0xff] %v2777
        %2842 = vst [vmem:[%s233 + $0xc8] sm:$0xff] %v2778
        %2843 = vst [vmem:[%s233 + $0xd0] sm:$0xff] %v2779
        %2844 = vst [vmem:[%s233 + $0xd8] sm:$0xff] %v2780
        %2845 = vst [vmem:[%s233 + $0xe0] sm:$0xff] %v2781
        %2846 = vst [vmem:[%s233 + $0xe8] sm:$0xff] %v2782
        %2847 = vst [vmem:[%s233 + $0xf0] sm:$0xff] %v2783
        %2848 = vst [vmem:[%s233 + $0xf8] sm:$0xff] %v2784
        %2849 = vst [vmem:[%s233 + $0x100] sm:$0xff] %v2785
        %2850 = vst [vmem:[%s233 + $0x108] sm:$0xff] %v2786
        %2851 = vst [vmem:[%s233 + $0x110] sm:$0xff] %v2787
        %2852 = vst [vmem:[%s233 + $0x118] sm:$0xff] %v2788
        %2853 = vst [vmem:[%s233 + $0x120] sm:$0xff] %v2789
        %2854 = vst [vmem:[%s233 + $0x128] sm:$0xff] %v2790
        %2855 = vst [vmem:[%s233 + $0x130] sm:$0xff] %v2791
        %2856 = vst [vmem:[%s233 + $0x138] sm:$0xff] %v2792
        %2857 = vst [vmem:[%s233 + $0x140] sm:$0xff] %v2793
        %2858 = vst [vmem:[%s233 + $0x148] sm:$0xff] %v2794
        %2859 = vst [vmem:[%s233 + $0x150] sm:$0xff] %v2795
        %2860 = vst [vmem:[%s233 + $0x158] sm:$0xff] %v2796
        %2861 = vst [vmem:[%s233 + $0x160] sm:$0xff] %v2797
        %2862 = vst [vmem:[%s233 + $0x168] sm:$0xff] %v2798
        %2863 = vst [vmem:[%s233 + $0x170] sm:$0xff] %v2799
        %2864 = vst [vmem:[%s233 + $0x178] sm:$0xff] %v2800
        %2865 = vst [vmem:[%s233 + $0x180] sm:$0xff] %v2801
        %2866 = vst [vmem:[%s233 + $0x188] sm:$0xff] %v2802
        %2867 = vst [vmem:[%s233 + $0x190] sm:$0xff] %v2803
        %2868 = vst [vmem:[%s233 + $0x198] sm:$0xff] %v2804
        %2869 = vst [vmem:[%s233 + $0x1a0] sm:$0xff] %v2805
        %2870 = vst [vmem:[%s233 + $0x1a8] sm:$0xff] %v2806
        %2871 = vst [vmem:[%s233 + $0x1b0] sm:$0xff] %v2807
        %2872 = vst [vmem:[%s233 + $0x1b8] sm:$0xff] %v2808
        %2873 = vst [vmem:[%s233 + $0x1c0] sm:$0xff] %v2809
        %2874 = vst [vmem:[%s233 + $0x1c8] sm:$0xff] %v2810
        %2875 = vst [vmem:[%s233 + $0x1d0] sm:$0xff] %v2811
        %2876 = vst [vmem:[%s233 + $0x1d8] sm:$0xff] %v2812
        %2877 = vst [vmem:[%s233 + $0x1e0] sm:$0xff] %v2813
        %2878 = vst [vmem:[%s233 + $0x1e8] sm:$0xff] %v2814
        %2879 = vst [vmem:[%s233 + $0x1f0] sm:$0xff] %v2815
        %2880 = vst [vmem:[%s233 + $0x1f8] sm:$0xff] %v2816
        %s2881 = smul.u32 64, %s20
        %p2882 = scmp.lt.s32.totalorder %s2881, 127
        %s2883 = scalar_select %p2882, %s2881, 127
        %s2884 = smul.addr %s2883, 8
        %s2885 = scalar_lea.vmem %s3, %s2884
        // Predicated region
        $region41: #{text2vec_forward.1} parent=31 // pred_check
          %p2886 = pneg %p111
        $region42: #{text2vec_forward.1} parent=31 // pred_check_branch
          %2888 = sbr.rel (%p2886) target = $region44
        $region43: #{text2vec_forward.1} parent=31 // pred_region
          %s2889 = smul.u32 64, %s20
        $region44: #{text2vec_forward.1} parent=31 // pred_fallthru
          _
      $region32: #{text2vec_forward.1} parent=5 // pred_fallthru
        _
      %p2890 = scmp.le.s32.totalorder 2, %s15
      // Predicated region
      $region45: #{text2vec_forward.1} parent=5 // pred_check
        %p2891 = pneg %p2890
      $region46: #{text2vec_forward.1} parent=5 // pred_check_branch
        %2893 = sbr.rel (%p2891) target = $region48
      $region47: #{text2vec_forward.1} parent=5 // pred_region
        %s2894 = ssub.s32 %s15, 2
        // Predicated region
        $region49: #{text2vec_forward.1} parent=47 // pred_check
          %p2895 = pneg %p117
        $region50: #{text2vec_forward.1} parent=47 // pred_check_branch
          %2897 = sbr.rel (%p2895) target = $region52
        $region51: #{text2vec_forward.1} parent=47 // pred_region
          %s2898 = smul.u32 64, %s21
          %p2899 = scmp.lt.s32.totalorder %s2898, 127
          %s2900 = scalar_select %p2899, %s2898, 127
          %s2901 = smul.addr %s2900, 8
          %s2902 = scalar_lea.vmem %s3, %s2901
        $region52: #{text2vec_forward.1} parent=47 // pred_fallthru
          _
      $region48: #{text2vec_forward.1} parent=5 // pred_fallthru
        _
    $region6: #{text2vec_forward.1} parent=1 // loop_footer
      %s19 = sadd.s32 1, %s15
    $region7: #{text2vec_forward.1} parent=1 // loop_footer_branch
      %14 = sbr.rel target = $region3
    $region8: #{text2vec_forward.1} parent=1 // loop_exit
      _
    %2903 = vsyncpa [#allocation3], 1
    %s2904 = scalar_lea.sflag [#allocation3], 1
    %2905 = vsyncpa %s2904, 1
    %2906 = vsyncpa [#allocation5], 1
    %s2907 = scalar_lea.sflag [#allocation5], 1
    %2908 = vsyncpa %s2907, 1

</llo_original>
